<compile_context>
chip_gen: v7x
topology: tpu7x:2x2x1
jax: 0.10.0
libtpu: 0.0.40
codegen_flags: <defaults>
</compile_context>

<pallas_src>
import functools

import jax
import jax.numpy as jnp
from jax import lax
from jax.experimental import pallas as pl
from jax.experimental.pallas import tpu as pltpu


def _round_up(x, m):
    return (x + m - 1) // m * m


def _attn_kernel(x_ref, w_ref, b_ref, gamma_ref, o_ref, qkv_ref,
                 *, Cq_pad, tq, compute_dtype):
    """One (batch, query-tile) grid step.

    x_ref   : (C, N)            f32   input feature map (resident across q tiles)
    w_ref   : (2*Cq_pad+C, C)   bf16  fused [Wq_pad; Wk_pad; Wv]
    b_ref   : (2*Cq_pad+C, 1)   f32   fused [bq_pad; 0; bv]   (bk cancels)
    gamma   : (1,)              f32   SMEM scalar
    o_ref   : (C, tq)           f32   output tile (lane-dense along tq)
    qkv_ref : (2*Cq_pad+C, N)   bf16  VMEM scratch, persists across q tiles
    """
    qi = pl.program_id(1)

    # --- fused Q/K/V projection, once per batch element ----------------------
    @pl.when(qi == 0)
    def _():
        x_c = x_ref[...].astype(compute_dtype)                       # (C, N)
        qkv = lax.dot_general(
            w_ref[...], x_c,
            dimension_numbers=(((1,), (0,)), ((), ())),
            preferred_element_type=jnp.float32)                      # (tot, N) f32
        # (tot, 1) bias broadcast along lanes; once per batch -> negligible.
        qkv_ref[...] = (qkv + b_ref[...]).astype(compute_dtype)

    start = pl.multiple_of(qi * tq, tq)
    q_t = qkv_ref[0:Cq_pad, pl.ds(start, tq)]                        # (Cq_pad, tq)
    k = qkv_ref[Cq_pad:2 * Cq_pad, :]                                # (Cq_pad, N)
    v = qkv_ref[2 * Cq_pad:, :]                                      # (C, N)

    # --- scores in (keys, queries) layout: scores[j, i] = <k_j, q_i> ---------
    # p (after exp) is then already the natural (K=N, tq) RHS of the PV matmul,
    # so no relayout of the large p tensor is needed.
    scores = lax.dot_general(
        k, q_t, dimension_numbers=(((0,), (0,)), ((), ())),
        preferred_element_type=jnp.float32)                          # (N, tq)

    # --- unnormalized softmax over keys (axis 0), f32 -------------------------
    m = jnp.max(scores, axis=0, keepdims=True)                       # (1, tq)
    p = jnp.exp(scores - m)                                          # (N, tq)
    l = jnp.sum(p, axis=0, keepdims=True)                            # (1, tq)

    # --- PV with unnormalized p; normalization folded into the epilogue ------
    pv = lax.dot_general(
        v, p.astype(compute_dtype),
        dimension_numbers=(((1,), (0,)), ((), ())),
        preferred_element_type=jnp.float32)                          # (C, tq)

    x_t = x_ref[:, pl.ds(start, tq)]                                 # (C, tq) f32
    inv_l = pl.reciprocal(l, approx=True)                            # EUP, (1, tq)
    # Since v includes bv, (pv * inv_l) == value_conv(x) @ attention exactly
    # (rows of normalized attention sum to 1).
    o_ref[...] = gamma_ref[0] * (pv * inv_l) + x_t


def _pick_tq(N):
    """Largest query tile that keeps the (tq, N) score tile comfortably in VMEM.

    For N <= 1024 the full (N, N) f32 score matrix is <= 4 MiB, so use a single
    tile (no q grid axis, one contiguous output slab).  For larger N, cap at
    1024 (a few MiB per step) which also stays within v7x's 64 MiB VMEM; v5e /
    v6e (128 MiB) could go larger, but 1024 already amortizes per-step overhead.
    Never shrink below 256 unless N forces it (MXU free-dim granularity).
    """
    if N <= 1024:
        return N
    for cand in (1024, 512, 256, 128):
        if N % cand == 0:
            return cand
    return N  # odd N: fall back to a single tile


def self_attention_pallas(x_nchw, wq, bq, wk, bk, wv, bv, gamma,
                          *, tq=None, compute_dtype=jnp.bfloat16):
    """x_nchw: (B, C, H, W) f32.  Weights in PyTorch 1x1-conv layout:
       wq/wk: (C//8, C), wv: (C, C), biases 1-D, gamma: (1,)."""
    B, C, H, W = x_nchw.shape
    N = H * W
    Cq = wq.shape[0]
    # Pad q/k segments to a multiple of 16 rows so the bf16 scratch slices stay
    # sublane-pack aligned for any channel count (padded rows are all-zero and
    # contribute nothing to the scores -> exact).
    Cq_pad = _round_up(Cq, 16)
    tot = 2 * Cq_pad + C

    if tq is None:
        tq = _pick_tq(N)
    assert N % tq == 0, "query tile must divide N"
    nq = N // tq

    # NCHW -> (B, C, N) is a pure reshape: no HBM transpose round-trips.
    x_flat = x_nchw.reshape(B, C, N)

    # Fused projection weights (cast once, outside the kernel).
    pad = Cq_pad - Cq
    wq_p = jnp.pad(wq, ((0, pad), (0, 0)))
    wk_p = jnp.pad(wk, ((0, pad), (0, 0)))
    bq_p = jnp.pad(bq, (0, pad))
    w_fused = jnp.concatenate([wq_p, wk_p, wv], axis=0).astype(compute_dtype)
    # bk is redundant (constant along the softmax axis) -> zeros.  bv stays in
    # the value projection (exact through the epilogue normalization).
    # NOTE: the (tot, 1) block lane-pads in VMEM (~tot*128*4 B) — negligible here.
    b_fused = jnp.concatenate(
        [bq_p, jnp.zeros((Cq_pad,), jnp.float32), bv]
    ).reshape(tot, 1).astype(jnp.float32)

    kernel = functools.partial(
        _attn_kernel, Cq_pad=Cq_pad, tq=tq, compute_dtype=compute_dtype)

    # Advisory cost estimate so XLA can overlap this call with neighboring convs.
    flops = B * (2 * tot * C * N     # fused QKV projection
                 + 2 * Cq * N * N    # QK scores
                 + 2 * C * N * N)    # PV
    cost = pl.CostEstimate(
        flops=flops,
        transcendentals=B * N * N,   # exp
        bytes_accessed=(B * C * N * 4          # x read
                        + tot * C * 2          # fused W
                        + tot * 4              # fused bias
                        + B * C * N * 4))      # output write

    # TODO(synk): for B == 1 (or odd B) on v7x megacore, one TensorCore idles;
    # recomputing the projection per q-tile would let the q axis be "parallel".
    out_flat = pl.pallas_call(
        kernel,
        out_shape=jax.ShapeDtypeStruct((B, C, N), jnp.float32),
        grid_spec=pltpu.PrefetchScalarGridSpec(
            num_scalar_prefetch=0,
            grid=(B, nq),
            in_specs=[
                # x: full (C, N) slab per batch element; index map ignores the
                # q-tile axis so Pallas keeps it resident across q tiles.
                pl.BlockSpec((None, C, N), lambda b, q: (b, 0, 0)),
                pl.BlockSpec((tot, C), lambda b, q: (0, 0)),       # fused W
                pl.BlockSpec((tot, 1), lambda b, q: (0, 0)),       # fused bias
                pl.BlockSpec(memory_space=pltpu.SMEM),             # gamma scalar
            ],
            # lane-dense (C, tq) output tiles; with tq == N this is one
            # contiguous slab per batch element.
            out_specs=pl.BlockSpec((None, C, tq), lambda b, q: (b, 0, q)),
            scratch_shapes=[pltpu.VMEM((tot, N), compute_dtype)],  # fused QKV
        ),
        compiler_params=pltpu.CompilerParams(
            # batch is parallel (megacore); q-tile axis carries the QKV scratch.
            # No vmem_limit override: the live set is far below the scoped
            # defaults, and requesting v7x's full 64 MiB would remove headroom.
            dimension_semantics=("parallel", "arbitrary"),
        ),
        cost_estimate=cost,
    )(x_flat, w_fused, b_fused, gamma)

    return out_flat.reshape(B, C, H, W)


def reference_self_attention(x_nchw, wq, bq, wk, bk, wv, bv, gamma):
    """Pure-JAX f32 reference mirroring the PyTorch forward exactly (incl. bk)."""
    B, C, H, W = x_nchw.shape
    N = H * W
    xf = x_nchw.reshape(B, C, N)
    q = jnp.einsum('dc,bcn->bdn', wq, xf) + bq[None, :, None]   # (B, Cq, N)
    k = jnp.einsum('dc,bcn->bdn', wk, xf) + bk[None, :, None]   # (B, Cq, N)
    v = jnp.einsum('dc,bcn->bdn', wv, xf) + bv[None, :, None]   # (B, C,  N)
    energy = jnp.einsum('bdn,bdm->bnm', q, k)                   # (B, N, N)
    attn = jax.nn.softmax(energy, axis=-1)
    out = jnp.einsum('bcm,bnm->bcn', v, attn)                   # (B, C, N)
    return gamma[0] * out.reshape(B, C, H, W) + x_nchw


if __name__ == "__main__":
    # Shapes matching Discriminator.attn1 (in_dim = 128) at a small spatial size.
    B, C, H, W = 2, 128, 16, 16
    Cq = C // 8                                  # 16

    key = jax.random.PRNGKey(0)
    ks = jax.random.split(key, 7)
    x = jax.random.normal(ks[0], (B, C, H, W), dtype=jnp.float32)

    # PyTorch Conv2d default-like init: U(-1/sqrt(C_in), 1/sqrt(C_in))
    lim = 1.0 / float(C) ** 0.5
    wq = jax.random.uniform(ks[1], (Cq, C), jnp.float32, -lim, lim)
    bq = jax.random.uniform(ks[2], (Cq,), jnp.float32, -lim, lim)
    wk = jax.random.uniform(ks[3], (Cq, C), jnp.float32, -lim, lim)
    bk = jax.random.uniform(ks[4], (Cq,), jnp.float32, -lim, lim)
    wv = jax.random.uniform(ks[5], (C, C), jnp.float32, -lim, lim)
    bv = jax.random.uniform(ks[6], (C,), jnp.float32, -lim, lim)
    # Module __init__ sets gamma = 0 (output would equal x); use a nonzero
    # value so the attention path is actually exercised.
    gamma = jnp.array([0.5], dtype=jnp.float32)

    ref = reference_self_attention(x, wq, bq, wk, bk, wv, bv, gamma)

    # Default path: tq = N = 256 (single query tile, grid = (B, 1)).
    out = self_attention_pallas(x, wq, bq, wk, bk, wv, bv, gamma)
    out = jax.block_until_ready(out)
    assert out.shape == (B, C, H, W)
    # bf16 MXU operands + approx EUP reciprocal vs f32 reference -> relaxed
    # tolerance on purpose (fine for a GAN discriminator; exact when gamma=0).
    assert jnp.allclose(out, ref, atol=3e-2, rtol=3e-2), "mismatch (tq=N) vs reference"

    # Also exercise the tiled q-axis path used for large feature maps (nq > 1).
    out_t = self_attention_pallas(x, wq, bq, wk, bk, wv, bv, gamma, tq=128)
    out_t = jax.block_until_ready(out_t)
    assert jnp.allclose(out_t, ref, atol=3e-2, rtol=3e-2), "mismatch (tq=128) vs reference"

    print("KERNEL_OK")
</pallas_src>

<mosaic_0001>
module attributes {stable_mosaic.version = 11 : i64} {
  func.func @_attn_kernel(%arg0: i32, %arg1: i32, %arg2: memref<1x128x256xf32, #tpu.memory_space<vmem>>, %arg3: memref<160x128xbf16, #tpu.memory_space<vmem>>, %arg4: memref<160x1xf32, #tpu.memory_space<vmem>>, %arg5: memref<1xf32, #tpu.memory_space<smem>>, %arg6: memref<1x128x256xf32, #tpu.memory_space<vmem>>, %arg7: memref<160x256xbf16, #tpu.memory_space<vmem>>) attributes {dimension_semantics = [#tpu.dimension_semantics<parallel>, #tpu.dimension_semantics<arbitrary>], iteration_bounds = array<i64: 2, 1>, scalar_prefetch = 0 : i64, scratch_operands = 1 : i64, tpu.core_type = #tpu.core_type<tc>, window_params = [{transform_indices = @transform_0, window_bounds = array<i64: 1, 128, 256>}, {pipeline_mode = #tpu.pipeline_mode<synchronous>, transform_indices = @transform_1, window_bounds = array<i64: 160, 128>}, {pipeline_mode = #tpu.pipeline_mode<synchronous>, transform_indices = @transform_2, window_bounds = array<i64: 160, 1>}, {transform_indices = @transform_3, window_bounds = array<i64: 1>}, {transform_indices = @transform_4, window_bounds = array<i64: 1, 128, 256>}]} {
    %c0_i32 = arith.constant 0 : i32
    %0 = arith.cmpi eq, %arg1, %c0_i32 : i32
    %1 = arith.extui %0 : i1 to i32
    %c0_i32_0 = arith.constant 0 : i32
    %2 = arith.cmpi ne, %1, %c0_i32_0 : i32
    scf.if %2 {
      %c0_12 = arith.constant 0 : index
      %c0_13 = arith.constant 0 : index
      %c0_14 = arith.constant 0 : index
      %32 = vector.load %arg2[%c0_12, %c0_13, %c0_14] : memref<1x128x256xf32, #tpu.memory_space<vmem>>, vector<1x128x256xf32>
      %33 = vector.shape_cast %32 : vector<1x128x256xf32> to vector<128x256xf32>
      %34 = arith.truncf %33 : vector<128x256xf32> to vector<128x256xbf16>
      %c0_15 = arith.constant 0 : index
      %c0_16 = arith.constant 0 : index
      %35 = vector.load %arg3[%c0_15, %c0_16] : memref<160x128xbf16, #tpu.memory_space<vmem>>, vector<160x128xbf16>
      %cst_17 = arith.constant dense<0.000000e+00> : vector<160x256xf32>
      %36 = tpu.matmul %35, %34, %cst_17 {dimension_numbers = #tpu.dot_dimension_numbers<[1], [0], [0], [1], [0, 0, 1, 1], [], []>} : vector<160x128xbf16>, vector<128x256xbf16>, vector<160x256xf32> -> vector<160x256xf32>
      %c0_18 = arith.constant 0 : index
      %c0_19 = arith.constant 0 : index
      %37 = vector.load %arg4[%c0_18, %c0_19] : memref<160x1xf32, #tpu.memory_space<vmem>>, vector<160x1xf32>
      %38 = vector.broadcast %37 : vector<160x1xf32> to vector<160x256xf32>
      %39 = arith.addf %36, %38 : vector<160x256xf32>
      %40 = arith.truncf %39 : vector<160x256xf32> to vector<160x256xbf16>
      %c0_20 = arith.constant 0 : index
      %c0_21 = arith.constant 0 : index
      %41 = vector.load %arg7[%c0_20, %c0_21] : memref<160x256xbf16, #tpu.memory_space<vmem>>, vector<160x256xbf16>
      tpu.vector_store %arg7[%c0_20, %c0_21], %40 {strides = array<i32>} : memref<160x256xbf16, #tpu.memory_space<vmem>>, vector<160x256xbf16>,
    } else {
    }
    %c256_i32 = arith.constant 256 : i32
    %3 = arith.muli %arg1, %c256_i32 : i32
    %4 = tpu.assume_multiple %3, 256 : i32
    %c0 = arith.constant 0 : index
    %5 = arith.index_cast %4 : i32 to index
    %6 = vector.load %arg7[%c0, %5] : memref<160x256xbf16, #tpu.memory_space<vmem>>, vector<16x256xbf16>
    %c16 = arith.constant 16 : index
    %c0_1 = arith.constant 0 : index
    %7 = vector.load %arg7[%c16, %c0_1] : memref<160x256xbf16, #tpu.memory_space<vmem>>, vector<16x256xbf16>
    %c32 = arith.constant 32 : index
    %c0_2 = arith.constant 0 : index
    %8 = vector.load %arg7[%c32, %c0_2] : memref<160x256xbf16, #tpu.memory_space<vmem>>, vector<128x256xbf16>
    %cst = arith.constant dense<0.000000e+00> : vector<256x256xf32>
    %9 = tpu.matmul %7, %6, %cst {dimension_numbers = #tpu.dot_dimension_numbers<[0], [0], [1], [1], [0, 1, 1, 1], [], []>} : vector<16x256xbf16>, vector<16x256xbf16>, vector<256x256xf32> -> vector<256x256xf32>
    %cst_3 = arith.constant dense<0xFF800000> : vector<256xf32>
    %10 = vector.multi_reduction <maximumf>, %9, %cst_3 [0] : vector<256x256xf32> to vector<256xf32>
    %11 = vector.shape_cast %10 : vector<256xf32> to vector<1x256xf32>
    %12 = vector.broadcast %11 : vector<1x256xf32> to vector<256x256xf32>
    %13 = arith.subf %9, %12 : vector<256x256xf32>
    %14 = math.exp %13 : vector<256x256xf32>
    %cst_4 = arith.constant dense<0.000000e+00> : vector<256xf32>
    %15 = vector.multi_reduction <add>, %14, %cst_4 [0] : vector<256x256xf32> to vector<256xf32>
    %16 = vector.shape_cast %15 : vector<256xf32> to vector<1x256xf32>
    %17 = arith.truncf %14 : vector<256x256xf32> to vector<256x256xbf16>
    %cst_5 = arith.constant dense<0.000000e+00> : vector<128x256xf32>
    %18 = tpu.matmul %8, %17, %cst_5 {dimension_numbers = #tpu.dot_dimension_numbers<[1], [0], [0], [1], [0, 0, 1, 1], [], []>} : vector<128x256xbf16>, vector<256x256xbf16>, vector<128x256xf32> -> vector<128x256xf32>
    %c0_6 = arith.constant 0 : index
    %c0_7 = arith.constant 0 : index
    %19 = arith.index_cast %4 : i32 to index
    %20 = vector.load %arg2[%c0_6, %c0_7, %19] : memref<1x128x256xf32, #tpu.memory_space<vmem>>, vector<1x128x256xf32>
    %21 = vector.shape_cast %20 : vector<1x128x256xf32> to vector<128x256xf32>
    %22 = tpu.reciprocal %16 {approx = true} : vector<1x256xf32> -> vector<1x256xf32>
    %c0_8 = arith.constant 0 : index
    %23 = memref.load %arg5[%c0_8] : memref<1xf32, #tpu.memory_space<smem>>
    %24 = vector.broadcast %22 : vector<1x256xf32> to vector<128x256xf32>
    %25 = arith.mulf %18, %24 : vector<128x256xf32>
    %26 = vector.broadcast %23 : f32 to vector<128x256xf32>
    %27 = arith.mulf %26, %25 : vector<128x256xf32>
    %28 = arith.addf %27, %21 : vector<128x256xf32>
    %c0_9 = arith.constant 0 : index
    %c0_10 = arith.constant 0 : index
    %c0_11 = arith.constant 0 : index
    %29 = vector.load %arg6[%c0_9, %c0_10, %c0_11] : memref<1x128x256xf32, #tpu.memory_space<vmem>>, vector<1x128x256xf32>
    %30 = vector.shape_cast %29 : vector<1x128x256xf32> to vector<128x256xf32>
    %31 = vector.shape_cast %28 : vector<128x256xf32> to vector<1x128x256xf32>
    tpu.vector_store %arg6[%c0_9, %c0_10, %c0_11], %31 {strides = array<i32>} : memref<1x128x256xf32, #tpu.memory_space<vmem>>, vector<1x128x256xf32>,
    return
  }
  func.func @transform_0(%arg0: i32, %arg1: i32) -> (i32, i32, i32) {
    %c0_i32 = arith.constant 0 : i32
    %c0_i32_0 = arith.constant 0 : i32
    %c0_i32_1 = arith.constant 0 : i32
    return %arg0, %c0_i32, %c0_i32_0 : i32, i32, i32
  }
  func.func @transform_1(%arg0: i32, %arg1: i32) -> (i32, i32) {
    %c0_i32 = arith.constant 0 : i32
    %c0_i32_0 = arith.constant 0 : i32
    %c0_i32_1 = arith.constant 0 : i32
    return %c0_i32, %c0_i32_0 : i32, i32
  }
  func.func @transform_2(%arg0: i32, %arg1: i32) -> (i32, i32) {
    %c0_i32 = arith.constant 0 : i32
    %c0_i32_0 = arith.constant 0 : i32
    %c0_i32_1 = arith.constant 0 : i32
    return %c0_i32, %c0_i32_0 : i32, i32
  }
  func.func @transform_3(%arg0: i32, %arg1: i32) -> i32 {
    %c0_i32 = arith.constant 0 : i32
    %c0_i32_0 = arith.constant 0 : i32
    return %c0_i32 : i32
  }
  func.func @transform_4(%arg0: i32, %arg1: i32) -> (i32, i32, i32) {
    %c0_i32 = arith.constant 0 : i32
    %c0_i32_0 = arith.constant 0 : i32
    return %arg0, %c0_i32, %arg1 : i32, i32, i32
  }
}

</mosaic_0001>

<llo_original>
// kernel: tpu_custom_call.1
$region0: #{tpu_custom_call.1}
  #allocation0 [shape = 'u32[]', space=smem, size = 0x4, offset = 0x4, fixed_abs, tag = 'smem constant byte address 0x4 - core index']
  #allocation1 [shape = 'u32[144,128]{1,0:T(1,128)}', space=vmem, size = 0x12000, scoped, tag = 'internal scratch']
  #allocation2 [shape = 'bf16[160,256]{1,0:T(16,128)(2,1)}', space=vmem, size = 0x14000, scoped, tag = 'scratch operand']
  #allocation3 [shape = 'f32[1]{0:T(128)S(6)}', space=smem, size = 0x200, scoped, tag = 'scoped memory for tpu_custom_call.1']
  %s0 = inlined_call_operand.hbm [shape: f32[2,128,256], index: 0, kind: input, shape index: {}]
  %s1 = inlined_call_operand.vmem [shape: bf16[160,128], index: 1, kind: input, shape index: {}]
  %s2 = inlined_call_operand.vmem [shape: f32[160,1], index: 2, kind: input, shape index: {}]
  %s3 = inlined_call_operand.<no memory space> [shape: f32[1], index: 3, kind: input, shape index: {}]
  %s4 = inlined_call_operand.hbm [shape: f32[2,128,256], index: 4, kind: output, shape index: {}]
  %s5 = sld [smem:[#allocation0]]
  $region57: #{tpu_custom_call.1} parent=0
    _
  %s7 = ssub.s32 1, %s5
  %s8 = scalar_select 0, %s7, %s5
  %9 = sst [smem:[#allocation3]] %s3
  $region1: #{tpu_custom_call.1} parent=0
    #allocation4 [shape = 'u8[262144]{0}', space=vmem, size = 0x40000, scoped, tag = 'input window, operand 0']
    #allocation5 [shape = 's32[2]{0}', space=sflag, size = 0x8, scoped, tag = 'scoped memory for tpu_custom_call.1']
    #allocation6 [shape = 's32[2]{0}', space=sflag, size = 0x8, scoped, tag = 'scoped memory for tpu_custom_call.1']
    #allocation7 [shape = 'u8[262144]{0}', space=vmem, size = 0x40000, scoped, tag = 'output window, operand 0']
    %10 = vsyncpa [#allocation5], 0
    %s11 = scalar_lea.sflag [#allocation5], 1
    %12 = vsyncpa %s11, 0
    %13 = vsyncpa [#allocation6], 0
    %s14 = scalar_lea.sflag [#allocation6], 1
    %15 = vsyncpa %s14, 0
    loop: start=0, step=1, limit=4
    $region2: #{tpu_custom_call.1} parent=1 // loop_pre_header
      _
    $region3: #{tpu_custom_call.1} parent=1 // loop_header
      %s17 = sphi 0, %s21
      %p18 = scmp.ge.s32.totalorder %s17, 4
      %s24 = sphi 0, %s36
      %s25 = sphi 0, %s32
      %s26 = sphi 0, %s24
      %s27 = sphi 0, %s25
      %s28 = sphi 0, %s26
      %s29 = sphi 0, %s27
      %s39 = sphi 0, %s41
      %s42 = sphi 0, %s39
      %s43 = sphi 0, %s42
      %s59 = sphi 0, %s43
      %s63 = sphi 0, %s63
      %s65 = sphi 0, %s63
      %s66 = sphi 0, %s65
      %s80 = sphi 0, %s66
      %s84 = sphi 0, %s84
      %s86 = sphi 0, %s84
      %s87 = sphi 0, %s86
      %s101 = sphi 0, %s87
      %s105 = sphi 0, %s105
      %s107 = sphi 0, %s105
      %s108 = sphi 0, %s107
      %s122 = sphi 0, %s108
      %s130 = sphi 0, %s132
      %s133 = sphi 0, %s130
      %s134 = sphi 0, %s133
      %s150 = sphi 0, %s134
    $region4: #{tpu_custom_call.1} parent=1 // loop_header_branch
      %20 = sbr.rel (%p18) target = $region8
    $region5: #{tpu_custom_call.1} parent=1 // loop_body
      %s22 = ssub.s32 %s17, 1
      %s23 = ssub.s32 %s17, 2
      %s30 = sadd.s32 1, %s25
      %p31 = scmp.ge.s32.totalorder %s30, 1
      %s32 = scalar_select %p31, 0, %s30
      %s33 = sadd.s32 1, %s24
      %s34 = scalar_select %p31, %s33, %s24
      %p35 = scmp.ge.s32.totalorder %s34, 2
      %s36 = scalar_select %p35, 0, %s34
      %s37 = ssub.s32 %s24, %s36
      %p38 = scmp.eq.s32.totalorder %s37, 0
      %s40 = sadd.s32 %s39, 1
      %s41 = scalar_select %p38, %s39, %s40
      %p44 = pneg %p38
      %p45 = scmp.eq.s32.totalorder %s17, 1
      %p46 = por %p44, %p45
      %p47 = scmp.ne.s32.totalorder %s39, %s42
      %p48 = scmp.eq.s32.totalorder %s17, 0
      %p49 = por %p47, %p48
      %p50 = scmp.ne.s32.totalorder %s39, %s42
      %p51 = scmp.eq.s32.totalorder %s22, 1
      %p52 = por %p50, %p51
      %p53 = scmp.ne.s32.totalorder %s42, %s43
      %p54 = scmp.eq.s32.totalorder %s22, 0
      %p55 = por %p53, %p54
      %p56 = scmp.ne.s32.totalorder %s42, %s43
      %p57 = scmp.eq.s32.totalorder %s23, 1
      %p58 = por %p56, %p57
      %p60 = scmp.ne.s32.totalorder %s43, %s59
      %p61 = scmp.eq.s32.totalorder %s23, 0
      %p62 = por %p60, %p61
      %s64 = sadd.s32 %s63, 1
      %p67 = scmp.eq.s32.totalorder %s17, 1
      %p68 = scmp.ne.s32.totalorder %s63, %s65
      %p69 = scmp.eq.s32.totalorder %s17, 0
      %p70 = por %p68, %p69
      %p71 = scmp.ne.s32.totalorder %s63, %s65
      %p72 = scmp.eq.s32.totalorder %s22, 1
      %p73 = por %p71, %p72
      %p74 = scmp.ne.s32.totalorder %s65, %s66
      %p75 = scmp.eq.s32.totalorder %s22, 0
      %p76 = por %p74, %p75
      %p77 = scmp.ne.s32.totalorder %s65, %s66
      %p78 = scmp.eq.s32.totalorder %s23, 1
      %p79 = por %p77, %p78
      %p81 = scmp.ne.s32.totalorder %s66, %s80
      %p82 = scmp.eq.s32.totalorder %s23, 0
      %p83 = por %p81, %p82
      %s85 = sadd.s32 %s84, 1
      %p88 = scmp.eq.s32.totalorder %s17, 1
      %p89 = scmp.ne.s32.totalorder %s84, %s86
      %p90 = scmp.eq.s32.totalorder %s17, 0
      %p91 = por %p89, %p90
      %p92 = scmp.ne.s32.totalorder %s84, %s86
      %p93 = scmp.eq.s32.totalorder %s22, 1
      %p94 = por %p92, %p93
      %p95 = scmp.ne.s32.totalorder %s86, %s87
      %p96 = scmp.eq.s32.totalorder %s22, 0
      %p97 = por %p95, %p96
      %p98 = scmp.ne.s32.totalorder %s86, %s87
      %p99 = scmp.eq.s32.totalorder %s23, 1
      %p100 = por %p98, %p99
      %p102 = scmp.ne.s32.totalorder %s87, %s101
      %p103 = scmp.eq.s32.totalorder %s23, 0
      %p104 = por %p102, %p103
      %s106 = sadd.s32 %s105, 1
      %p109 = scmp.eq.s32.totalorder %s17, 1
      %p110 = scmp.ne.s32.totalorder %s105, %s107
      %p111 = scmp.eq.s32.totalorder %s17, 0
      %p112 = por %p110, %p111
      %p113 = scmp.ne.s32.totalorder %s105, %s107
      %p114 = scmp.eq.s32.totalorder %s22, 1
      %p115 = por %p113, %p114
      %p116 = scmp.ne.s32.totalorder %s107, %s108
      %p117 = scmp.eq.s32.totalorder %s22, 0
      %p118 = por %p116, %p117
      %p119 = scmp.ne.s32.totalorder %s107, %s108
      %p120 = scmp.eq.s32.totalorder %s23, 1
      %p121 = por %p119, %p120
      %p123 = scmp.ne.s32.totalorder %s108, %s122
      %p124 = scmp.eq.s32.totalorder %s23, 0
      %p125 = por %p123, %p124
      %s126 = ssub.s32 %s24, %s36
      %s127 = ssub.s32 %s25, %s32
      %s128 = sor.u32 %s126, %s127
      %p129 = scmp.eq.s32.totalorder %s128, 0
      %s131 = sadd.s32 %s130, 1
      %s132 = scalar_select %p129, %s130, %s131
      %p135 = pneg %p129
      %p136 = scmp.eq.s32.totalorder %s17, 1
      %p137 = por %p135, %p136
      %p138 = scmp.ne.s32.totalorder %s130, %s133
      %p139 = scmp.eq.s32.totalorder %s17, 0
      %p140 = por %p138, %p139
      %p141 = scmp.ne.s32.totalorder %s130, %s133
      %p142 = scmp.eq.s32.totalorder %s22, 1
      %p143 = por %p141, %p142
      %p144 = scmp.ne.s32.totalorder %s133, %s134
      %p145 = scmp.eq.s32.totalorder %s22, 0
      %p146 = por %p144, %p145
      %p147 = scmp.ne.s32.totalorder %s133, %s134
      %p148 = scmp.eq.s32.totalorder %s23, 1
      %p149 = por %p147, %p148
      %p151 = scmp.ne.s32.totalorder %s134, %s150
      %p152 = scmp.eq.s32.totalorder %s23, 0
      %p153 = por %p151, %p152
      %p154 = scmp.le.s32.totalorder 1, %s17
      %p155 = scmp.lt.s32.totalorder %s17, 3
      %p156 = pnand %p154, %p155
      %p157 = pneg %p156
      // Predicated region
      $region9: #{tpu_custom_call.1} parent=5 // pred_check
        _
      $region10: #{tpu_custom_call.1} parent=5 // pred_check_branch
        %159 = sbr.rel (%p156) target = $region12
      $region11: #{tpu_custom_call.1} parent=5 // pred_region
        %s160 = ssub.s32 %s17, 1
        // Predicated region
        $region13: #{tpu_custom_call.1} parent=11 // pred_check
          %p161 = pneg %p76
        $region14: #{tpu_custom_call.1} parent=11 // pred_check_branch
          %163 = sbr.rel (%p161) target = $region16
        $region15: #{tpu_custom_call.1} parent=11 // pred_region
          _
        $region16: #{tpu_custom_call.1} parent=11 // pred_fallthru
          _
        // Predicated region
        $region17: #{tpu_custom_call.1} parent=11 // pred_check
          %p164 = pneg %p97
        $region18: #{tpu_custom_call.1} parent=11 // pred_check_branch
          %166 = sbr.rel (%p164) target = $region20
        $region19: #{tpu_custom_call.1} parent=11 // pred_region
          _
        $region20: #{tpu_custom_call.1} parent=11 // pred_fallthru
          _
        // Predicated region
        $region21: #{tpu_custom_call.1} parent=11 // pred_check
          %p167 = pneg %p118
        $region22: #{tpu_custom_call.1} parent=11 // pred_check_branch
          %169 = sbr.rel (%p167) target = $region24
        $region23: #{tpu_custom_call.1} parent=11 // pred_region
          _
        $region24: #{tpu_custom_call.1} parent=11 // pred_fallthru
          _
      $region12: #{tpu_custom_call.1} parent=5 // pred_fallthru
        _
      %p170 = scmp.lt.s32.totalorder %s17, 2
      // Predicated region
      $region25: #{tpu_custom_call.1} parent=5 // pred_check
        %p171 = pneg %p170
      $region26: #{tpu_custom_call.1} parent=5 // pred_check_branch
        %173 = sbr.rel (%p171) target = $region28
      $region27: #{tpu_custom_call.1} parent=5 // pred_region
        // Predicated region
        $region29: #{tpu_custom_call.1} parent=27 // pred_check
          %p174 = pneg %p49
        $region30: #{tpu_custom_call.1} parent=27 // pred_check_branch
          %176 = sbr.rel (%p174) target = $region32
        $region31: #{tpu_custom_call.1} parent=27 // pred_region
          %s177 = sand.u32 %s39, 1
          %s178 = scalar_lea.sflag [#allocation5], %s177
          %s179 = sand.u32 %s39, 1
          %s180 = smul.addr %s179, 256
          %s181 = scalar_lea.vmem [#allocation4], %s180
          %s183 = ssub.s32 4096, 4096
          %184 = vsyncadd %s178, %s183
          %s185 = smul.addr %s24, 32
          %s186 = smul.addr %s185, 128
          %s187 = scalar_lea.hbm %s0, %s186
          %s188 = sshll.u32 %s181, 4
          %s189 = int_to_ptr.vmem [resolvable:$true] %s188
          %194 = dma.hbm_to_vmem [thread:$0]  %s187, 4096, %s189, %s178, 256, 256, 16
        $region32: #{tpu_custom_call.1} parent=27 // pred_fallthru
          _
      $region28: #{tpu_custom_call.1} parent=5 // pred_fallthru
        _
      %p195 = scmp.le.s32.totalorder 1, %s17
      %p196 = scmp.lt.s32.totalorder %s17, 3
      %p197 = pnand %p195, %p196
      %p198 = pneg %p197
      // Predicated region
      $region33: #{tpu_custom_call.1} parent=5 // pred_check
        _
      $region34: #{tpu_custom_call.1} parent=5 // pred_check_branch
        %200 = sbr.rel (%p197) target = $region36
      $region35: #{tpu_custom_call.1} parent=5 // pred_region
        %s201 = ssub.s32 %s17, 1
        %s202 = sand.u32 %s42, 1
        %s203 = scalar_lea.sflag [#allocation5], %s202
        %s204 = sand.u32 %s42, 1
        %s205 = smul.addr %s204, 256
        %s206 = scalar_lea.vmem [#allocation4], %s205
        // Predicated region
        $region37: #{tpu_custom_call.1} parent=35 // pred_check
          %p207 = pneg %p55
        $region38: #{tpu_custom_call.1} parent=35 // pred_check_branch
          %209 = sbr.rel (%p207) target = $region40
        $region39: #{tpu_custom_call.1} parent=35 // pred_region
          %210 = dma.done %s203, 4096
        $region40: #{tpu_custom_call.1} parent=35 // pred_fallthru
          _
        %s211 = sand.u32 %s42, 1
        %s212 = scalar_lea.sflag [#allocation5], %s211
        %s213 = sand.u32 %s42, 1
        %s214 = smul.addr %s213, 256
        %s215 = scalar_lea.vmem [#allocation4], %s214
        %p216 = pneg %p55
        %p217 = pneg %p52
        %p218 = pneg %p76
        %p219 = pneg %p73
        %p220 = pneg %p97
        %p221 = pneg %p94
        %p222 = pneg %p118
        %p223 = pneg %p115
        %p224 = pneg %p146
        %p225 = pneg %p143
        %s226 = sand.u32 %s133, 1
        %s227 = scalar_lea.sflag [#allocation6], %s226
        %s228 = sand.u32 %s133, 1
        %s229 = smul.addr %s228, 256
        %s230 = scalar_lea.vmem [#allocation7], %s229
        %s231 = smul.u32 2, %s27
        %p233 = scmp.eq.s32.totalorder %s27, 0
        // Predicated region
        $region41: #{tpu_custom_call.1} parent=35 // pred_check
          %p234 = pneg %p233
        $region42: #{tpu_custom_call.1} parent=35 // pred_check_branch
          %236 = sbr.rel (%p234) target = $region44
        $region43: #{tpu_custom_call.1} parent=35 // pred_region
          %v237 = vld [vmem:[%s206] sm:$0xff]
          %v238 = vld [vmem:[%s206 + $0x8] sm:$0xff]
          %v239 = vld [vmem:[%s206 + $0x10] sm:$0xff]
          %v240 = vld [vmem:[%s206 + $0x18] sm:$0xff]
          %v241 = vld [vmem:[%s206 + $0x20] sm:$0xff]
          %v242 = vld [vmem:[%s206 + $0x28] sm:$0xff]
          %v243 = vld [vmem:[%s206 + $0x30] sm:$0xff]
          %v244 = vld [vmem:[%s206 + $0x38] sm:$0xff]
          %v245 = vld [vmem:[%s206 + $0x40] sm:$0xff]
          %v246 = vld [vmem:[%s206 + $0x48] sm:$0xff]
          %v247 = vld [vmem:[%s206 + $0x50] sm:$0xff]
          %v248 = vld [vmem:[%s206 + $0x58] sm:$0xff]
          %v249 = vld [vmem:[%s206 + $0x60] sm:$0xff]
          %v250 = vld [vmem:[%s206 + $0x68] sm:$0xff]
          %v251 = vld [vmem:[%s206 + $0x70] sm:$0xff]
          %v252 = vld [vmem:[%s206 + $0x78] sm:$0xff]
          %v253 = vld [vmem:[%s206 + $0x80] sm:$0xff]
          %v254 = vld [vmem:[%s206 + $0x88] sm:$0xff]
          %v255 = vld [vmem:[%s206 + $0x90] sm:$0xff]
          %v256 = vld [vmem:[%s206 + $0x98] sm:$0xff]
          %v257 = vld [vmem:[%s206 + $0xa0] sm:$0xff]
          %v258 = vld [vmem:[%s206 + $0xa8] sm:$0xff]
          %v259 = vld [vmem:[%s206 + $0xb0] sm:$0xff]
          %v260 = vld [vmem:[%s206 + $0xb8] sm:$0xff]
          %v261 = vld [vmem:[%s206 + $0xc0] sm:$0xff]
          %v262 = vld [vmem:[%s206 + $0xc8] sm:$0xff]
          %v263 = vld [vmem:[%s206 + $0xd0] sm:$0xff]
          %v264 = vld [vmem:[%s206 + $0xd8] sm:$0xff]
          %v265 = vld [vmem:[%s206 + $0xe0] sm:$0xff]
          %v266 = vld [vmem:[%s206 + $0xe8] sm:$0xff]
          %v267 = vld [vmem:[%s206 + $0xf0] sm:$0xff]
          %v268 = vld [vmem:[%s206 + $0xf8] sm:$0xff]
          %v269 = vpack.c.bf16 %v239, %v237
          %v270 = vpack.c.bf16 %v240, %v238
          %v271 = vpack.c.bf16 %v243, %v241
          %v272 = vpack.c.bf16 %v244, %v242
          %v273 = vpack.c.bf16 %v247, %v245
          %v274 = vpack.c.bf16 %v248, %v246
          %v275 = vpack.c.bf16 %v251, %v249
          %v276 = vpack.c.bf16 %v252, %v250
          %v277 = vpack.c.bf16 %v255, %v253
          %v278 = vpack.c.bf16 %v256, %v254
          %v279 = vpack.c.bf16 %v259, %v257
          %v280 = vpack.c.bf16 %v260, %v258
          %v281 = vpack.c.bf16 %v263, %v261
          %v282 = vpack.c.bf16 %v264, %v262
          %v283 = vpack.c.bf16 %v267, %v265
          %v284 = vpack.c.bf16 %v268, %v266
          %v285 = vld [vmem:[%s1] sm:$0xf]
          %v286 = vld [vmem:[%s1 + $0x4] sm:$0xf]
          %v287 = vld [vmem:[%s1 + $0x8] sm:$0xf]
          %v288 = vld [vmem:[%s1 + $0xc] sm:$0xf]
          %v289 = vld [vmem:[%s1 + $0x10] sm:$0xf]
          %v290 = vld [vmem:[%s1 + $0x14] sm:$0xf]
          %v291 = vld [vmem:[%s1 + $0x18] sm:$0xf]
          %v292 = vld [vmem:[%s1 + $0x1c] sm:$0xf]
          %v293 = vld [vmem:[%s1 + $0x20] sm:$0xf]
          %v294 = vld [vmem:[%s1 + $0x24] sm:$0xf]
          %v295 = vld [vmem:[%s1 + $0x28] sm:$0xf]
          %v296 = vld [vmem:[%s1 + $0x2c] sm:$0xf]
          %v297 = vld [vmem:[%s1 + $0x30] sm:$0xf]
          %v298 = vld [vmem:[%s1 + $0x34] sm:$0xf]
          %v299 = vld [vmem:[%s1 + $0x38] sm:$0xf]
          %v300 = vld [vmem:[%s1 + $0x3c] sm:$0xf]
          %v301 = vld [vmem:[%s1 + $0x40] sm:$0xf]
          %v302 = vld [vmem:[%s1 + $0x44] sm:$0xf]
          %v303 = vld [vmem:[%s1 + $0x48] sm:$0xf]
          %v304 = vld [vmem:[%s1 + $0x4c] sm:$0xf]
          %v305 = vld [vmem:[%s2] sm:$0xff]
          %v306 = vld [vmem:[%s2 + $0x8] sm:$0xff]
          %v307 = vld [vmem:[%s2 + $0x10] sm:$0xff]
          %v308 = vld [vmem:[%s2 + $0x18] sm:$0xff]
          %v309 = vld [vmem:[%s2 + $0x20] sm:$0xff]
          %v310 = vld [vmem:[%s2 + $0x28] sm:$0xff]
          %v311 = vld [vmem:[%s2 + $0x30] sm:$0xff]
          %v312 = vld [vmem:[%s2 + $0x38] sm:$0xff]
          %v313 = vld [vmem:[%s2 + $0x40] sm:$0xff]
          %v314 = vld [vmem:[%s2 + $0x48] sm:$0xff]
          %v315 = vld [vmem:[%s2 + $0x50] sm:$0xff]
          %v316 = vld [vmem:[%s2 + $0x58] sm:$0xff]
          %v317 = vld [vmem:[%s2 + $0x60] sm:$0xff]
          %v318 = vld [vmem:[%s2 + $0x68] sm:$0xff]
          %v319 = vld [vmem:[%s2 + $0x70] sm:$0xff]
          %v320 = vld [vmem:[%s2 + $0x78] sm:$0xff]
          %v321 = vld [vmem:[%s2 + $0x80] sm:$0xff]
          %v322 = vld [vmem:[%s2 + $0x88] sm:$0xff]
          %v323 = vld [vmem:[%s2 + $0x90] sm:$0xff]
          %v324 = vld [vmem:[%s2 + $0x98] sm:$0xff]
          %326 = vset.pattern.permute.xlu0 0
          %327 = vperm.xlu0 %326, %v305
          %v328 = vpop.permute.xlu0 %327
          %331 = vset.pattern.permute.xlu0 0
          %332 = vperm.xlu0 %331, %v306
          %v333 = vpop.permute.xlu0 %332
          %336 = vset.pattern.permute.xlu0 0
          %337 = vperm.xlu0 %336, %v307
          %v338 = vpop.permute.xlu0 %337
          %341 = vset.pattern.permute.xlu0 0
          %342 = vperm.xlu0 %341, %v308
          %v343 = vpop.permute.xlu0 %342
          %346 = vset.pattern.permute.xlu0 0
          %347 = vperm.xlu0 %346, %v309
          %v348 = vpop.permute.xlu0 %347
          %351 = vset.pattern.permute.xlu0 0
          %352 = vperm.xlu0 %351, %v310
          %v353 = vpop.permute.xlu0 %352
          %356 = vset.pattern.permute.xlu0 0
          %357 = vperm.xlu0 %356, %v311
          %v358 = vpop.permute.xlu0 %357
          %361 = vset.pattern.permute.xlu0 0
          %362 = vperm.xlu0 %361, %v312
          %v363 = vpop.permute.xlu0 %362
          %366 = vset.pattern.permute.xlu0 0
          %367 = vperm.xlu0 %366, %v313
          %v368 = vpop.permute.xlu0 %367
          %371 = vset.pattern.permute.xlu0 0
          %372 = vperm.xlu0 %371, %v314
          %v373 = vpop.permute.xlu0 %372
          %376 = vset.pattern.permute.xlu0 0
          %377 = vperm.xlu0 %376, %v315
          %v378 = vpop.permute.xlu0 %377
          %381 = vset.pattern.permute.xlu0 0
          %382 = vperm.xlu0 %381, %v316
          %v383 = vpop.permute.xlu0 %382
          %386 = vset.pattern.permute.xlu0 0
          %387 = vperm.xlu0 %386, %v317
          %v388 = vpop.permute.xlu0 %387
          %391 = vset.pattern.permute.xlu0 0
          %392 = vperm.xlu0 %391, %v318
          %v393 = vpop.permute.xlu0 %392
          %396 = vset.pattern.permute.xlu0 0
          %397 = vperm.xlu0 %396, %v319
          %v398 = vpop.permute.xlu0 %397
          %401 = vset.pattern.permute.xlu0 0
          %402 = vperm.xlu0 %401, %v320
          %v403 = vpop.permute.xlu0 %402
          %406 = vset.pattern.permute.xlu0 0
          %407 = vperm.xlu0 %406, %v321
          %v408 = vpop.permute.xlu0 %407
          %411 = vset.pattern.permute.xlu0 0
          %412 = vperm.xlu0 %411, %v322
          %v413 = vpop.permute.xlu0 %412
          %416 = vset.pattern.permute.xlu0 0
          %417 = vperm.xlu0 %416, %v323
          %v418 = vpop.permute.xlu0 %417
          %421 = vset.pattern.permute.xlu0 0
          %422 = vperm.xlu0 %421, %v324
          %v423 = vpop.permute.xlu0 %422
          %v445 = vunpack.c.l.b16 %v285
          %v446 = vunpack.c.l.b16 %v286
          %v447 = vunpack.c.l.b16 %v287
          %v448 = vunpack.c.l.b16 %v288
          %v449 = vunpack.c.l.b16 %v289
          %v450 = vunpack.c.l.b16 %v290
          %v451 = vunpack.c.l.b16 %v291
          %v452 = vunpack.c.l.b16 %v292
          %v453 = vunpack.c.l.b16 %v293
          %v454 = vunpack.c.l.b16 %v294
          %v455 = vunpack.c.l.b16 %v295
          %v456 = vunpack.c.l.b16 %v296
          %v457 = vunpack.c.l.b16 %v297
          %v458 = vunpack.c.l.b16 %v298
          %v459 = vunpack.c.l.b16 %v299
          %v460 = vunpack.c.l.b16 %v300
          %v461 = vunpack.c.l.b16 %v301
          %v462 = vunpack.c.l.b16 %v302
          %v463 = vunpack.c.l.b16 %v303
          %v464 = vunpack.c.l.b16 %v304
          %v465 = vpack.c.b16 %v446, %v445
          %v466 = vpack.c.b16 %v448, %v447
          %v467 = vpack.c.b16 %v450, %v449
          %v468 = vpack.c.b16 %v452, %v451
          %v469 = vpack.c.b16 %v454, %v453
          %v470 = vpack.c.b16 %v456, %v455
          %v471 = vpack.c.b16 %v458, %v457
          %v472 = vpack.c.b16 %v460, %v459
          %v473 = vpack.c.b16 %v462, %v461
          %v474 = vpack.c.b16 %v464, %v463
          %485 = vmatprep.subr.bf16.mxu0 %v270
          %486 = vmatpush1.bf16.msra.mxu0 %v269
          %487 = vmatprep.subr.bf16.mxu0 %v272
          %488 = vmatpush1.bf16.msra.mxu0 %v271
          %489 = vmatprep.subr.bf16.mxu0 %v274
          %490 = vmatpush1.bf16.msra.mxu0 %v273
          %491 = vmatprep.subr.bf16.mxu0 %v276
          %492 = vmatpush1.bf16.msra.mxu0 %v275
          %493 = vmatprep.subr.bf16.mxu0 %v278
          %494 = vmatpush1.bf16.msra.mxu0 %v277
          %495 = vmatprep.subr.bf16.mxu0 %v280
          %496 = vmatpush1.bf16.msra.mxu0 %v279
          %497 = vmatprep.subr.bf16.mxu0 %v282
          %498 = vmatpush1.bf16.msra.mxu0 %v281
          %499 = vmatprep.subr.bf16.mxu0 %v284
          %500 = vmatpush1.bf16.msra.mxu0 %v283
          %501 = vmatprep.subr.bf16.mxu0 0
          %502 = vmatpush1.bf16.msra.mxu0 0
          %503 = vmatprep.subr.bf16.mxu0 0
          %504 = vmatpush1.bf16.msra.mxu0 0
          %505 = vmatprep.subr.bf16.mxu0 0
          %506 = vmatpush1.bf16.msra.mxu0 0
          %507 = vmatprep.subr.bf16.mxu0 0
          %508 = vmatpush1.bf16.msra.mxu0 0
          %509 = vmatprep.subr.bf16.mxu0 0
          %510 = vmatpush1.bf16.msra.mxu0 0
          %511 = vmatprep.subr.bf16.mxu0 0
          %512 = vmatpush1.bf16.msra.mxu0 0
          %513 = vmatprep.subr.bf16.mxu0 0
          %514 = vmatpush1.bf16.msra.mxu0 0
          %515 = vmatprep.subr.bf16.mxu0 0
          %516 = vmatpush1.bf16.msra.mxu0 0
          %517 = vmatprep.mubr.bf16.mxu0 0
          %518 = vmatmul.mubr.bf16.gmra.mrb[0].mxu0 %v465
          %v519 = vpop.f32.mrb[0].mxu0
          %v520 = vadd.f32 %v328, %v519
          %v521 = vpop.f32.mrb[0].mxu0
          %v522 = vadd.f32 %v328, %v521
          %v523 = vpop.f32.mrb[0].mxu0
          %v524 = vadd.f32 %v333, %v523
          %v525 = vpop.f32.mrb[0].mxu0
          %v526 = vadd.f32 %v333, %v525
          %527 = vmatprep.mubr.bf16.mxu0 0
          %528 = vmatmul.mubr.bf16.gmra.mrb[0].mxu0 %v466
          %v529 = vpop.f32.mrb[0].mxu0
          %v530 = vadd.f32 %v338, %v529
          %v531 = vpop.f32.mrb[0].mxu0
          %v532 = vadd.f32 %v338, %v531
          %v533 = vpop.f32.mrb[0].mxu0
          %v534 = vadd.f32 %v343, %v533
          %v535 = vpop.f32.mrb[0].mxu0
          %v536 = vadd.f32 %v343, %v535
          %537 = vmatprep.mubr.bf16.mxu0 0
          %538 = vmatmul.mubr.bf16.gmra.mrb[0].mxu0 %v467
          %v539 = vpop.f32.mrb[0].mxu0
          %v540 = vadd.f32 %v348, %v539
          %v541 = vpop.f32.mrb[0].mxu0
          %v542 = vadd.f32 %v348, %v541
          %v543 = vpop.f32.mrb[0].mxu0
          %v544 = vadd.f32 %v353, %v543
          %v545 = vpop.f32.mrb[0].mxu0
          %v546 = vadd.f32 %v353, %v545
          %547 = vmatprep.mubr.bf16.mxu0 0
          %548 = vmatmul.mubr.bf16.gmra.mrb[0].mxu0 %v468
          %v549 = vpop.f32.mrb[0].mxu0
          %v550 = vadd.f32 %v358, %v549
          %v551 = vpop.f32.mrb[0].mxu0
          %v552 = vadd.f32 %v358, %v551
          %v553 = vpop.f32.mrb[0].mxu0
          %v554 = vadd.f32 %v363, %v553
          %v555 = vpop.f32.mrb[0].mxu0
          %v556 = vadd.f32 %v363, %v555
          %557 = vmatprep.mubr.bf16.mxu0 0
          %558 = vmatmul.mubr.bf16.gmra.mrb[0].mxu0 %v469
          %v559 = vpop.f32.mrb[0].mxu0
          %v560 = vadd.f32 %v368, %v559
          %v561 = vpop.f32.mrb[0].mxu0
          %v562 = vadd.f32 %v368, %v561
          %v563 = vpop.f32.mrb[0].mxu0
          %v564 = vadd.f32 %v373, %v563
          %v565 = vpop.f32.mrb[0].mxu0
          %v566 = vadd.f32 %v373, %v565
          %567 = vmatprep.mubr.bf16.mxu0 0
          %568 = vmatmul.mubr.bf16.gmra.mrb[0].mxu0 %v470
          %v569 = vpop.f32.mrb[0].mxu0
          %v570 = vadd.f32 %v378, %v569
          %v571 = vpop.f32.mrb[0].mxu0
          %v572 = vadd.f32 %v378, %v571
          %v573 = vpop.f32.mrb[0].mxu0
          %v574 = vadd.f32 %v383, %v573
          %v575 = vpop.f32.mrb[0].mxu0
          %v576 = vadd.f32 %v383, %v575
          %577 = vmatprep.mubr.bf16.mxu0 0
          %578 = vmatmul.mubr.bf16.gmra.mrb[0].mxu0 %v471
          %v579 = vpop.f32.mrb[0].mxu0
          %v580 = vadd.f32 %v388, %v579
          %v581 = vpop.f32.mrb[0].mxu0
          %v582 = vadd.f32 %v388, %v581
          %v583 = vpop.f32.mrb[0].mxu0
          %v584 = vadd.f32 %v393, %v583
          %v585 = vpop.f32.mrb[0].mxu0
          %v586 = vadd.f32 %v393, %v585
          %587 = vmatprep.mubr.bf16.mxu0 0
          %588 = vmatmul.mubr.bf16.gmra.mrb[0].mxu0 %v472
          %v589 = vpop.f32.mrb[0].mxu0
          %v590 = vadd.f32 %v398, %v589
          %v591 = vpop.f32.mrb[0].mxu0
          %v592 = vadd.f32 %v398, %v591
          %v593 = vpop.f32.mrb[0].mxu0
          %v594 = vadd.f32 %v403, %v593
          %v595 = vpop.f32.mrb[0].mxu0
          %v596 = vadd.f32 %v403, %v595
          %597 = vmatprep.mubr.bf16.mxu0 0
          %598 = vmatmul.mubr.bf16.gmra.mrb[0].mxu0 %v473
          %v599 = vpop.f32.mrb[0].mxu0
          %v600 = vadd.f32 %v408, %v599
          %v601 = vpop.f32.mrb[0].mxu0
          %v602 = vadd.f32 %v408, %v601
          %v603 = vpop.f32.mrb[0].mxu0
          %v604 = vadd.f32 %v413, %v603
          %v605 = vpop.f32.mrb[0].mxu0
          %v606 = vadd.f32 %v413, %v605
          %607 = vmatprep.mubr.bf16.mxu0 0
          %608 = vmatmul.mubr.bf16.gmra.mrb[0].mxu0 %v474
          %v609 = vpop.f32.mrb[0].mxu0
          %v610 = vadd.f32 %v418, %v609
          %v611 = vpop.f32.mrb[0].mxu0
          %v612 = vadd.f32 %v418, %v611
          %v613 = vpop.f32.mrb[0].mxu0
          %v614 = vadd.f32 %v423, %v613
          %v615 = vpop.f32.mrb[0].mxu0
          %v616 = vadd.f32 %v423, %v615
          %617 = vdwg.mxu0
          %v618 = vpack.c.bf16 %v524, %v520
          %v619 = vpack.c.bf16 %v526, %v522
          %v620 = vpack.c.bf16 %v534, %v530
          %v621 = vpack.c.bf16 %v536, %v532
          %v622 = vpack.c.bf16 %v544, %v540
          %v623 = vpack.c.bf16 %v546, %v542
          %v624 = vpack.c.bf16 %v554, %v550
          %v625 = vpack.c.bf16 %v556, %v552
          %v626 = vpack.c.bf16 %v564, %v560
          %v627 = vpack.c.bf16 %v566, %v562
          %v628 = vpack.c.bf16 %v574, %v570
          %v629 = vpack.c.bf16 %v576, %v572
          %v630 = vpack.c.bf16 %v584, %v580
          %v631 = vpack.c.bf16 %v586, %v582
          %v632 = vpack.c.bf16 %v594, %v590
          %v633 = vpack.c.bf16 %v596, %v592
          %v634 = vpack.c.bf16 %v604, %v600
          %v635 = vpack.c.bf16 %v606, %v602
          %v636 = vpack.c.bf16 %v614, %v610
          %v637 = vpack.c.bf16 %v616, %v612
          %638 = vst [vmem:[#allocation2] sm:$0xff] %v618
          %639 = vst [vmem:[#allocation2 + $0x8] sm:$0xff] %v619
          %640 = vst [vmem:[#allocation2 + $0x10] sm:$0xff] %v620
          %641 = vst [vmem:[#allocation2 + $0x18] sm:$0xff] %v621
          %642 = vst [vmem:[#allocation2 + $0x20] sm:$0xff] %v622
          %643 = vst [vmem:[#allocation2 + $0x28] sm:$0xff] %v623
          %644 = vst [vmem:[#allocation2 + $0x30] sm:$0xff] %v624
          %645 = vst [vmem:[#allocation2 + $0x38] sm:$0xff] %v625
          %646 = vst [vmem:[#allocation2 + $0x40] sm:$0xff] %v626
          %647 = vst [vmem:[#allocation2 + $0x48] sm:$0xff] %v627
          %648 = vst [vmem:[#allocation2 + $0x50] sm:$0xff] %v628
          %649 = vst [vmem:[#allocation2 + $0x58] sm:$0xff] %v629
          %650 = vst [vmem:[#allocation2 + $0x60] sm:$0xff] %v630
          %651 = vst [vmem:[#allocation2 + $0x68] sm:$0xff] %v631
          %652 = vst [vmem:[#allocation2 + $0x70] sm:$0xff] %v632
          %653 = vst [vmem:[#allocation2 + $0x78] sm:$0xff] %v633
          %654 = vst [vmem:[#allocation2 + $0x80] sm:$0xff] %v634
          %655 = vst [vmem:[#allocation2 + $0x88] sm:$0xff] %v635
          %656 = vst [vmem:[#allocation2 + $0x90] sm:$0xff] %v636
          %657 = vst [vmem:[#allocation2 + $0x98] sm:$0xff] %v637
        $region44: #{tpu_custom_call.1} parent=35 // pred_fallthru
          _
        %s658 = smul.u32 %s27, 256
        %s659 = sshra.s32 %s658, 7
        %s660 = sand.u32 %s658, 127
        %s661 = smul.addr %s659, 8
        %s662 = scalar_lea.vmem [#allocation2], %s661
        %v663 = vld [vmem:[%s662] sm:$0xff]
        %v664 = vld [vmem:[%s662 + $0x8] sm:$0xff]
        %v665 = vld [vmem:[#allocation2 + $0x10] sm:$0xff]
        %v666 = vld [vmem:[#allocation2 + $0x18] sm:$0xff]
        %v667 = vld [vmem:[#allocation2 + $0x20] sm:$0xff]
        %v668 = vld [vmem:[#allocation2 + $0x28] sm:$0xff]
        %v669 = vld [vmem:[#allocation2 + $0x30] sm:$0xff]
        %v670 = vld [vmem:[#allocation2 + $0x38] sm:$0xff]
        %v671 = vld [vmem:[#allocation2 + $0x40] sm:$0xff]
        %v672 = vld [vmem:[#allocation2 + $0x48] sm:$0xff]
        %v673 = vld [vmem:[#allocation2 + $0x50] sm:$0xff]
        %v674 = vld [vmem:[#allocation2 + $0x58] sm:$0xff]
        %v675 = vld [vmem:[#allocation2 + $0x60] sm:$0xff]
        %v676 = vld [vmem:[#allocation2 + $0x68] sm:$0xff]
        %v677 = vld [vmem:[#allocation2 + $0x70] sm:$0xff]
        %v678 = vld [vmem:[#allocation2 + $0x78] sm:$0xff]
        %v679 = vld [vmem:[#allocation2 + $0x80] sm:$0xff]
        %v680 = vld [vmem:[#allocation2 + $0x88] sm:$0xff]
        %v681 = vld [vmem:[#allocation2 + $0x90] sm:$0xff]
        %v682 = vld [vmem:[#allocation2 + $0x98] sm:$0xff]
        %683 = vxpose.xlu0.c.b16.start [1/8] %v665, 128
        %684 = vxpose.xlu0.c.b16.cont [2/8] 0, 128
        %685 = vxpose.xlu0.c.b16.cont [3/8] 0, 128
        %686 = vxpose.xlu0.c.b16.cont [4/8] 0, 128
        %687 = vxpose.xlu0.c.b16.cont [5/8] 0, 128
        %688 = vxpose.xlu0.c.b16.cont [6/8] 0, 128
        %689 = vxpose.xlu0.c.b16.cont [7/8] 0, 128
        %690 = vxpose.xlu0.c.b16.end [8/8] 0, 128
        %v691 = vpop.trf.xlu0
        %v692 = vpop.trf.xlu0
        %v693 = vpop.trf.xlu0
        %v694 = vpop.trf.xlu0
        %v695 = vpop.trf.xlu0
        %v696 = vpop.trf.xlu0
        %v697 = vpop.trf.xlu0
        %v698 = vpop.trf.xlu0
        %699 = vxpose.xlu0.c.b16.start [1/8] %v666, 128
        %700 = vxpose.xlu0.c.b16.cont [2/8] 0, 128
        %701 = vxpose.xlu0.c.b16.cont [3/8] 0, 128
        %702 = vxpose.xlu0.c.b16.cont [4/8] 0, 128
        %703 = vxpose.xlu0.c.b16.cont [5/8] 0, 128
        %704 = vxpose.xlu0.c.b16.cont [6/8] 0, 128
        %705 = vxpose.xlu0.c.b16.cont [7/8] 0, 128
        %706 = vxpose.xlu0.c.b16.end [8/8] 0, 128
        %v707 = vpop.trf.xlu0
        %v708 = vpop.trf.xlu0
        %v709 = vpop.trf.xlu0
        %v710 = vpop.trf.xlu0
        %v711 = vpop.trf.xlu0
        %v712 = vpop.trf.xlu0
        %v713 = vpop.trf.xlu0
        %v714 = vpop.trf.xlu0
        %vm715 = vcmask 130048
        %v717 = vsel %vm715, %v691, 0
        %v720 = vsel %vm715, %v692, 0
        %v723 = vsel %vm715, %v693, 0
        %v726 = vsel %vm715, %v694, 0
        %v729 = vsel %vm715, %v695, 0
        %v732 = vsel %vm715, %v696, 0
        %v735 = vsel %vm715, %v697, 0
        %v738 = vsel %vm715, %v698, 0
        %v741 = vsel %vm715, %v707, 0
        %v744 = vsel %vm715, %v708, 0
        %v747 = vsel %vm715, %v709, 0
        %v750 = vsel %vm715, %v710, 0
        %v753 = vsel %vm715, %v711, 0
        %v756 = vsel %vm715, %v712, 0
        %v759 = vsel %vm715, %v713, 0
        %v762 = vsel %vm715, %v714, 0
        %764 = vmatprep.subr.bf16.mxu0 %v664
        %765 = vmatpush1.bf16.msra.mxu0 %v663
        %766 = vmatprep.subr.bf16.mxu0 0
        %767 = vmatpush1.bf16.msra.mxu0 0
        %768 = vmatprep.subr.bf16.mxu0 0
        %769 = vmatpush1.bf16.msra.mxu0 0
        %770 = vmatprep.subr.bf16.mxu0 0
        %771 = vmatpush1.bf16.msra.mxu0 0
        %772 = vmatprep.subr.bf16.mxu0 0
        %773 = vmatpush1.bf16.msra.mxu0 0
        %774 = vmatprep.subr.bf16.mxu0 0
        %775 = vmatpush1.bf16.msra.mxu0 0
        %776 = vmatprep.subr.bf16.mxu0 0
        %777 = vmatpush1.bf16.msra.mxu0 0
        %778 = vmatprep.subr.bf16.mxu0 0
        %779 = vmatpush1.bf16.msra.mxu0 0
        %780 = vmatprep.subr.bf16.mxu0 0
        %781 = vmatpush1.bf16.msra.mxu0 0
        %782 = vmatprep.subr.bf16.mxu0 0
        %783 = vmatpush1.bf16.msra.mxu0 0
        %784 = vmatprep.subr.bf16.mxu0 0
        %785 = vmatpush1.bf16.msra.mxu0 0
        %786 = vmatprep.subr.bf16.mxu0 0
        %787 = vmatpush1.bf16.msra.mxu0 0
        %788 = vmatprep.subr.bf16.mxu0 0
        %789 = vmatpush1.bf16.msra.mxu0 0
        %790 = vmatprep.subr.bf16.mxu0 0
        %791 = vmatpush1.bf16.msra.mxu0 0
        %792 = vmatprep.subr.bf16.mxu0 0
        %793 = vmatpush1.bf16.msra.mxu0 0
        %794 = vmatprep.subr.bf16.mxu0 0
        %795 = vmatpush1.bf16.msra.mxu0 0
        %796 = vmatprep.mubr.bf16.mxu0 0
        %797 = vmatmul.mubr.bf16.gmra.mrb[0].mxu0 %v717
        %v798 = vpop.f32.mrb[0].mxu0
        %v799 = vadd.f32 0.0, %v798
        %v800 = vpop.f32.mrb[0].mxu0
        %v801 = vadd.f32 0.0, %v800
        %v802 = vpop.f32.mrb[0].mxu0
        %v803 = vadd.f32 0.0, %v802
        %v804 = vpop.f32.mrb[0].mxu0
        %v805 = vadd.f32 0.0, %v804
        %806 = vmatprep.mubr.bf16.mxu0 0
        %807 = vmatmul.mubr.bf16.gmra.mrb[0].mxu0 %v720
        %v808 = vpop.f32.mrb[0].mxu0
        %v809 = vadd.f32 0.0, %v808
        %v810 = vpop.f32.mrb[0].mxu0
        %v811 = vadd.f32 0.0, %v810
        %v812 = vpop.f32.mrb[0].mxu0
        %v813 = vadd.f32 0.0, %v812
        %v814 = vpop.f32.mrb[0].mxu0
        %v815 = vadd.f32 0.0, %v814
        %816 = vmatprep.mubr.bf16.mxu0 0
        %817 = vmatmul.mubr.bf16.gmra.mrb[0].mxu0 %v723
        %v818 = vpop.f32.mrb[0].mxu0
        %v819 = vadd.f32 0.0, %v818
        %v820 = vpop.f32.mrb[0].mxu0
        %v821 = vadd.f32 0.0, %v820
        %v822 = vpop.f32.mrb[0].mxu0
        %v823 = vadd.f32 0.0, %v822
        %v824 = vpop.f32.mrb[0].mxu0
        %v825 = vadd.f32 0.0, %v824
        %826 = vmatprep.mubr.bf16.mxu0 0
        %827 = vmatmul.mubr.bf16.gmra.mrb[0].mxu0 %v726
        %v828 = vpop.f32.mrb[0].mxu0
        %v829 = vadd.f32 0.0, %v828
        %v830 = vpop.f32.mrb[0].mxu0
        %v831 = vadd.f32 0.0, %v830
        %v832 = vpop.f32.mrb[0].mxu0
        %v833 = vadd.f32 0.0, %v832
        %v834 = vpop.f32.mrb[0].mxu0
        %v835 = vadd.f32 0.0, %v834
        %836 = vmatprep.mubr.bf16.mxu0 0
        %837 = vmatmul.mubr.bf16.gmra.mrb[0].mxu0 %v729
        %v838 = vpop.f32.mrb[0].mxu0
        %v839 = vadd.f32 0.0, %v838
        %v840 = vpop.f32.mrb[0].mxu0
        %v841 = vadd.f32 0.0, %v840
        %v842 = vpop.f32.mrb[0].mxu0
        %v843 = vadd.f32 0.0, %v842
        %v844 = vpop.f32.mrb[0].mxu0
        %v845 = vadd.f32 0.0, %v844
        %846 = vmatprep.mubr.bf16.mxu0 0
        %847 = vmatmul.mubr.bf16.gmra.mrb[0].mxu0 %v732
        %v848 = vpop.f32.mrb[0].mxu0
        %v849 = vadd.f32 0.0, %v848
        %v850 = vpop.f32.mrb[0].mxu0
        %v851 = vadd.f32 0.0, %v850
        %v852 = vpop.f32.mrb[0].mxu0
        %v853 = vadd.f32 0.0, %v852
        %v854 = vpop.f32.mrb[0].mxu0
        %v855 = vadd.f32 0.0, %v854
        %856 = vmatprep.mubr.bf16.mxu0 0
        %857 = vmatmul.mubr.bf16.gmra.mrb[0].mxu0 %v735
        %v858 = vpop.f32.mrb[0].mxu0
        %v859 = vadd.f32 0.0, %v858
        %v860 = vpop.f32.mrb[0].mxu0
        %v861 = vadd.f32 0.0, %v860
        %v862 = vpop.f32.mrb[0].mxu0
        %v863 = vadd.f32 0.0, %v862
        %v864 = vpop.f32.mrb[0].mxu0
        %v865 = vadd.f32 0.0, %v864
        %866 = vmatprep.mubr.bf16.mxu0 0
        %867 = vmatmul.mubr.bf16.gmra.mrb[0].mxu0 %v738
        %v868 = vpop.f32.mrb[0].mxu0
        %v869 = vadd.f32 0.0, %v868
        %v870 = vpop.f32.mrb[0].mxu0
        %v871 = vadd.f32 0.0, %v870
        %v872 = vpop.f32.mrb[0].mxu0
        %v873 = vadd.f32 0.0, %v872
        %v874 = vpop.f32.mrb[0].mxu0
        %v875 = vadd.f32 0.0, %v874
        %876 = vmatprep.mubr.bf16.mxu0 0
        %877 = vmatmul.mubr.bf16.gmra.mrb[0].mxu0 %v741
        %v878 = vpop.f32.mrb[0].mxu0
        %v879 = vadd.f32 0.0, %v878
        %v880 = vpop.f32.mrb[0].mxu0
        %v881 = vadd.f32 0.0, %v880
        %v882 = vpop.f32.mrb[0].mxu0
        %v883 = vadd.f32 0.0, %v882
        %v884 = vpop.f32.mrb[0].mxu0
        %v885 = vadd.f32 0.0, %v884
        %886 = vmatprep.mubr.bf16.mxu0 0
        %887 = vmatmul.mubr.bf16.gmra.mrb[0].mxu0 %v744
        %v888 = vpop.f32.mrb[0].mxu0
        %v889 = vadd.f32 0.0, %v888
        %v890 = vpop.f32.mrb[0].mxu0
        %v891 = vadd.f32 0.0, %v890
        %v892 = vpop.f32.mrb[0].mxu0
        %v893 = vadd.f32 0.0, %v892
        %v894 = vpop.f32.mrb[0].mxu0
        %v895 = vadd.f32 0.0, %v894
        %896 = vmatprep.mubr.bf16.mxu0 0
        %897 = vmatmul.mubr.bf16.gmra.mrb[0].mxu0 %v747
        %v898 = vpop.f32.mrb[0].mxu0
        %v899 = vadd.f32 0.0, %v898
        %v900 = vpop.f32.mrb[0].mxu0
        %v901 = vadd.f32 0.0, %v900
        %v902 = vpop.f32.mrb[0].mxu0
        %v903 = vadd.f32 0.0, %v902
        %v904 = vpop.f32.mrb[0].mxu0
        %v905 = vadd.f32 0.0, %v904
        %906 = vmatprep.mubr.bf16.mxu0 0
        %907 = vmatmul.mubr.bf16.gmra.mrb[0].mxu0 %v750
        %v908 = vpop.f32.mrb[0].mxu0
        %v909 = vadd.f32 0.0, %v908
        %v910 = vpop.f32.mrb[0].mxu0
        %v911 = vadd.f32 0.0, %v910
        %v912 = vpop.f32.mrb[0].mxu0
        %v913 = vadd.f32 0.0, %v912
        %v914 = vpop.f32.mrb[0].mxu0
        %v915 = vadd.f32 0.0, %v914
        %916 = vmatprep.mubr.bf16.mxu0 0
        %917 = vmatmul.mubr.bf16.gmra.mrb[0].mxu0 %v753
        %v918 = vpop.f32.mrb[0].mxu0
        %v919 = vadd.f32 0.0, %v918
        %v920 = vpop.f32.mrb[0].mxu0
        %v921 = vadd.f32 0.0, %v920
        %v922 = vpop.f32.mrb[0].mxu0
        %v923 = vadd.f32 0.0, %v922
        %v924 = vpop.f32.mrb[0].mxu0
        %v925 = vadd.f32 0.0, %v924
        %926 = vmatprep.mubr.bf16.mxu0 0
        %927 = vmatmul.mubr.bf16.gmra.mrb[0].mxu0 %v756
        %v928 = vpop.f32.mrb[0].mxu0
        %v929 = vadd.f32 0.0, %v928
        %v930 = vpop.f32.mrb[0].mxu0
        %v931 = vadd.f32 0.0, %v930
        %v932 = vpop.f32.mrb[0].mxu0
        %v933 = vadd.f32 0.0, %v932
        %v934 = vpop.f32.mrb[0].mxu0
        %v935 = vadd.f32 0.0, %v934
        %936 = vmatprep.mubr.bf16.mxu0 0
        %937 = vmatmul.mubr.bf16.gmra.mrb[0].mxu0 %v759
        %v938 = vpop.f32.mrb[0].mxu0
        %v939 = vadd.f32 0.0, %v938
        %v940 = vpop.f32.mrb[0].mxu0
        %v941 = vadd.f32 0.0, %v940
        %v942 = vpop.f32.mrb[0].mxu0
        %v943 = vadd.f32 0.0, %v942
        %v944 = vpop.f32.mrb[0].mxu0
        %v945 = vadd.f32 0.0, %v944
        %946 = vmatprep.mubr.bf16.mxu0 0
        %947 = vmatmul.mubr.bf16.gmra.mrb[0].mxu0 %v762
        %v948 = vpop.f32.mrb[0].mxu0
        %v949 = vadd.f32 0.0, %v948
        %v950 = vpop.f32.mrb[0].mxu0
        %v951 = vadd.f32 0.0, %v950
        %v952 = vpop.f32.mrb[0].mxu0
        %v953 = vadd.f32 0.0, %v952
        %v954 = vpop.f32.mrb[0].mxu0
        %v955 = vadd.f32 0.0, %v954
        %956 = vdwg.mxu0
        %v957 = vmax.f32 %v799, %v809
        %v958 = vmax.f32 %v803, %v813
        %v959 = vmax.f32 %v957, %v819
        %v960 = vmax.f32 %v958, %v823
        %v961 = vmax.f32 %v959, %v829
        %v962 = vmax.f32 %v960, %v833
        %v963 = vmax.f32 %v961, %v839
        %v964 = vmax.f32 %v962, %v843
        %v965 = vmax.f32 %v963, %v849
        %v966 = vmax.f32 %v964, %v853
        %v967 = vmax.f32 %v965, %v859
        %v968 = vmax.f32 %v966, %v863
        %v969 = vmax.f32 %v967, %v869
        %v970 = vmax.f32 %v968, %v873
        %v971 = vmax.f32 %v969, %v879
        %v972 = vmax.f32 %v970, %v883
        %v973 = vmax.f32 %v971, %v889
        %v974 = vmax.f32 %v972, %v893
        %v975 = vmax.f32 %v973, %v899
        %v976 = vmax.f32 %v974, %v903
        %v977 = vmax.f32 %v975, %v909
        %v978 = vmax.f32 %v976, %v913
        %v979 = vmax.f32 %v977, %v919
        %v980 = vmax.f32 %v978, %v923
        %v981 = vmax.f32 %v979, %v929
        %v982 = vmax.f32 %v980, %v933
        %v983 = vmax.f32 %v981, %v939
        %v984 = vmax.f32 %v982, %v943
        %v985 = vmax.f32 %v983, %v949
        %v986 = vmax.f32 %v984, %v953
        %v987 = vmax.f32 %v985, %v986
        %v988 = vrot.slane %v987, 4
        %v989 = vmax.f32 %v987, %v988
        %v990 = vrot.slane %v989, 2
        %v991 = vmax.f32 %v989, %v990
        %v992 = vrot.slane %v991, 1
        %v993 = vmax.f32 %v991, %v992
        %v994 = vmax.f32 %v801, %v811
        %v995 = vmax.f32 %v805, %v815
        %v996 = vmax.f32 %v994, %v821
        %v997 = vmax.f32 %v995, %v825
        %v998 = vmax.f32 %v996, %v831
        %v999 = vmax.f32 %v997, %v835
        %v1000 = vmax.f32 %v998, %v841
        %v1001 = vmax.f32 %v999, %v845
        %v1002 = vmax.f32 %v1000, %v851
        %v1003 = vmax.f32 %v1001, %v855
        %v1004 = vmax.f32 %v1002, %v861
        %v1005 = vmax.f32 %v1003, %v865
        %v1006 = vmax.f32 %v1004, %v871
        %v1007 = vmax.f32 %v1005, %v875
        %v1008 = vmax.f32 %v1006, %v881
        %v1009 = vmax.f32 %v1007, %v885
        %v1010 = vmax.f32 %v1008, %v891
        %v1011 = vmax.f32 %v1009, %v895
        %v1012 = vmax.f32 %v1010, %v901
        %v1013 = vmax.f32 %v1011, %v905
        %v1014 = vmax.f32 %v1012, %v911
        %v1015 = vmax.f32 %v1013, %v915
        %v1016 = vmax.f32 %v1014, %v921
        %v1017 = vmax.f32 %v1015, %v925
        %v1018 = vmax.f32 %v1016, %v931
        %v1019 = vmax.f32 %v1017, %v935
        %v1020 = vmax.f32 %v1018, %v941
        %v1021 = vmax.f32 %v1019, %v945
        %v1022 = vmax.f32 %v1020, %v951
        %v1023 = vmax.f32 %v1021, %v955
        %v1024 = vmax.f32 %v1022, %v1023
        %v1025 = vrot.slane %v1024, 4
        %v1026 = vmax.f32 %v1024, %v1025
        %v1027 = vrot.slane %v1026, 2
        %v1028 = vmax.f32 %v1026, %v1027
        %v1029 = vrot.slane %v1028, 1
        %v1030 = vmax.f32 %v1028, %v1029
        %v1031 = vsub.f32 %v799, %v993
        %v1032 = vsub.f32 %v801, %v1030
        %v1033 = vsub.f32 %v803, %v993
        %v1034 = vsub.f32 %v805, %v1030
        %v1035 = vsub.f32 %v809, %v993
        %v1036 = vsub.f32 %v811, %v1030
        %v1037 = vsub.f32 %v813, %v993
        %v1038 = vsub.f32 %v815, %v1030
        %v1039 = vsub.f32 %v819, %v993
        %v1040 = vsub.f32 %v821, %v1030
        %v1041 = vsub.f32 %v823, %v993
        %v1042 = vsub.f32 %v825, %v1030
        %v1043 = vsub.f32 %v829, %v993
        %v1044 = vsub.f32 %v831, %v1030
        %v1045 = vsub.f32 %v833, %v993
        %v1046 = vsub.f32 %v835, %v1030
        %v1047 = vsub.f32 %v839, %v993
        %v1048 = vsub.f32 %v841, %v1030
        %v1049 = vsub.f32 %v843, %v993
        %v1050 = vsub.f32 %v845, %v1030
        %v1051 = vsub.f32 %v849, %v993
        %v1052 = vsub.f32 %v851, %v1030
        %v1053 = vsub.f32 %v853, %v993
        %v1054 = vsub.f32 %v855, %v1030
        %v1055 = vsub.f32 %v859, %v993
        %v1056 = vsub.f32 %v861, %v1030
        %v1057 = vsub.f32 %v863, %v993
        %v1058 = vsub.f32 %v865, %v1030
        %v1059 = vsub.f32 %v869, %v993
        %v1060 = vsub.f32 %v871, %v1030
        %v1061 = vsub.f32 %v873, %v993
        %v1062 = vsub.f32 %v875, %v1030
        %v1063 = vsub.f32 %v879, %v993
        %v1064 = vsub.f32 %v881, %v1030
        %v1065 = vsub.f32 %v883, %v993
        %v1066 = vsub.f32 %v885, %v1030
        %v1067 = vsub.f32 %v889, %v993
        %v1068 = vsub.f32 %v891, %v1030
        %v1069 = vsub.f32 %v893, %v993
        %v1070 = vsub.f32 %v895, %v1030
        %v1071 = vsub.f32 %v899, %v993
        %v1072 = vsub.f32 %v901, %v1030
        %v1073 = vsub.f32 %v903, %v993
        %v1074 = vsub.f32 %v905, %v1030
        %v1075 = vsub.f32 %v909, %v993
        %v1076 = vsub.f32 %v911, %v1030
        %v1077 = vsub.f32 %v913, %v993
        %v1078 = vsub.f32 %v915, %v1030
        %v1079 = vsub.f32 %v919, %v993
        %v1080 = vsub.f32 %v921, %v1030
        %v1081 = vsub.f32 %v923, %v993
        %v1082 = vsub.f32 %v925, %v1030
        %v1083 = vsub.f32 %v929, %v993
        %v1084 = vsub.f32 %v931, %v1030
        %v1085 = vsub.f32 %v933, %v993
        %v1086 = vsub.f32 %v935, %v1030
        %v1087 = vsub.f32 %v939, %v993
        %v1088 = vsub.f32 %v941, %v1030
        %v1089 = vsub.f32 %v943, %v993
        %v1090 = vsub.f32 %v945, %v1030
        %v1091 = vsub.f32 %v949, %v993
        %v1092 = vsub.f32 %v951, %v1030
        %v1093 = vsub.f32 %v953, %v993
        %v1094 = vsub.f32 %v955, %v1030
        %v1095 = vmul.f32 %v1031, 1.442695
        %v1096 = vpow.pop %v1095
        %v1097 = vmul.f32 %v1032, 1.442695
        %v1098 = vpow.pop %v1097
        %v1099 = vmul.f32 %v1033, 1.442695
        %v1100 = vpow.pop %v1099
        %v1101 = vmul.f32 %v1034, 1.442695
        %v1102 = vpow.pop %v1101
        %v1103 = vmul.f32 %v1035, 1.442695
        %v1104 = vpow.pop %v1103
        %v1105 = vmul.f32 %v1036, 1.442695
        %v1106 = vpow.pop %v1105
        %v1107 = vmul.f32 %v1037, 1.442695
        %v1108 = vpow.pop %v1107
        %v1109 = vmul.f32 %v1038, 1.442695
        %v1110 = vpow.pop %v1109
        %v1111 = vmul.f32 %v1039, 1.442695
        %v1112 = vpow.pop %v1111
        %v1113 = vmul.f32 %v1040, 1.442695
        %v1114 = vpow.pop %v1113
        %v1115 = vmul.f32 %v1041, 1.442695
        %v1116 = vpow.pop %v1115
        %v1117 = vmul.f32 %v1042, 1.442695
        %v1118 = vpow.pop %v1117
        %v1119 = vmul.f32 %v1043, 1.442695
        %v1120 = vpow.pop %v1119
        %v1121 = vmul.f32 %v1044, 1.442695
        %v1122 = vpow.pop %v1121
        %v1123 = vmul.f32 %v1045, 1.442695
        %v1124 = vpow.pop %v1123
        %v1125 = vmul.f32 %v1046, 1.442695
        %v1126 = vpow.pop %v1125
        %v1127 = vmul.f32 %v1047, 1.442695
        %v1128 = vpow.pop %v1127
        %v1129 = vmul.f32 %v1048, 1.442695
        %v1130 = vpow.pop %v1129
        %v1131 = vmul.f32 %v1049, 1.442695
        %v1132 = vpow.pop %v1131
        %v1133 = vmul.f32 %v1050, 1.442695
        %v1134 = vpow.pop %v1133
        %v1135 = vmul.f32 %v1051, 1.442695
        %v1136 = vpow.pop %v1135
        %v1137 = vmul.f32 %v1052, 1.442695
        %v1138 = vpow.pop %v1137
        %v1139 = vmul.f32 %v1053, 1.442695
        %v1140 = vpow.pop %v1139
        %v1141 = vmul.f32 %v1054, 1.442695
        %v1142 = vpow.pop %v1141
        %v1143 = vmul.f32 %v1055, 1.442695
        %v1144 = vpow.pop %v1143
        %v1145 = vmul.f32 %v1056, 1.442695
        %v1146 = vpow.pop %v1145
        %v1147 = vmul.f32 %v1057, 1.442695
        %v1148 = vpow.pop %v1147
        %v1149 = vmul.f32 %v1058, 1.442695
        %v1150 = vpow.pop %v1149
        %v1151 = vmul.f32 %v1059, 1.442695
        %v1152 = vpow.pop %v1151
        %v1153 = vmul.f32 %v1060, 1.442695
        %v1154 = vpow.pop %v1153
        %v1155 = vmul.f32 %v1061, 1.442695
        %v1156 = vpow.pop %v1155
        %v1157 = vmul.f32 %v1062, 1.442695
        %v1158 = vpow.pop %v1157
        %v1159 = vmul.f32 %v1063, 1.442695
        %v1160 = vpow.pop %v1159
        %v1161 = vmul.f32 %v1064, 1.442695
        %v1162 = vpow.pop %v1161
        %v1163 = vmul.f32 %v1065, 1.442695
        %v1164 = vpow.pop %v1163
        %v1165 = vmul.f32 %v1066, 1.442695
        %v1166 = vpow.pop %v1165
        %v1167 = vmul.f32 %v1067, 1.442695
        %v1168 = vpow.pop %v1167
        %v1169 = vmul.f32 %v1068, 1.442695
        %v1170 = vpow.pop %v1169
        %v1171 = vmul.f32 %v1069, 1.442695
        %v1172 = vpow.pop %v1171
        %v1173 = vmul.f32 %v1070, 1.442695
        %v1174 = vpow.pop %v1173
        %v1175 = vmul.f32 %v1071, 1.442695
        %v1176 = vpow.pop %v1175
        %v1177 = vmul.f32 %v1072, 1.442695
        %v1178 = vpow.pop %v1177
        %v1179 = vmul.f32 %v1073, 1.442695
        %v1180 = vpow.pop %v1179
        %v1181 = vmul.f32 %v1074, 1.442695
        %v1182 = vpow.pop %v1181
        %v1183 = vmul.f32 %v1075, 1.442695
        %v1184 = vpow.pop %v1183
        %v1185 = vmul.f32 %v1076, 1.442695
        %v1186 = vpow.pop %v1185
        %v1187 = vmul.f32 %v1077, 1.442695
        %v1188 = vpow.pop %v1187
        %v1189 = vmul.f32 %v1078, 1.442695
        %v1190 = vpow.pop %v1189
        %v1191 = vmul.f32 %v1079, 1.442695
        %v1192 = vpow.pop %v1191
        %v1193 = vmul.f32 %v1080, 1.442695
        %v1194 = vpow.pop %v1193
        %v1195 = vmul.f32 %v1081, 1.442695
        %v1196 = vpow.pop %v1195
        %v1197 = vmul.f32 %v1082, 1.442695
        %v1198 = vpow.pop %v1197
        %v1199 = vmul.f32 %v1083, 1.442695
        %v1200 = vpow.pop %v1199
        %v1201 = vmul.f32 %v1084, 1.442695
        %v1202 = vpow.pop %v1201
        %v1203 = vmul.f32 %v1085, 1.442695
        %v1204 = vpow.pop %v1203
        %v1205 = vmul.f32 %v1086, 1.442695
        %v1206 = vpow.pop %v1205
        %v1207 = vmul.f32 %v1087, 1.442695
        %v1208 = vpow.pop %v1207
        %v1209 = vmul.f32 %v1088, 1.442695
        %v1210 = vpow.pop %v1209
        %v1211 = vmul.f32 %v1089, 1.442695
        %v1212 = vpow.pop %v1211
        %v1213 = vmul.f32 %v1090, 1.442695
        %v1214 = vpow.pop %v1213
        %v1215 = vmul.f32 %v1091, 1.442695
        %v1216 = vpow.pop %v1215
        %v1217 = vmul.f32 %v1092, 1.442695
        %v1218 = vpow.pop %v1217
        %v1219 = vmul.f32 %v1093, 1.442695
        %v1220 = vpow.pop %v1219
        %v1221 = vmul.f32 %v1094, 1.442695
        %v1222 = vpow.pop %v1221
        %v1223 = vadd.f32 %v1096, %v1100
        %v1224 = vadd.f32 %v1223, %v1104
        %v1225 = vadd.f32 %v1224, %v1108
        %v1226 = vadd.f32 %v1225, %v1112
        %v1227 = vadd.f32 %v1226, %v1116
        %v1228 = vadd.f32 %v1227, %v1120
        %v1229 = vadd.f32 %v1228, %v1124
        %v1230 = vadd.f32 %v1229, %v1128
        %v1231 = vadd.f32 %v1230, %v1132
        %v1232 = vadd.f32 %v1231, %v1136
        %v1233 = vadd.f32 %v1232, %v1140
        %v1234 = vadd.f32 %v1233, %v1144
        %v1235 = vadd.f32 %v1234, %v1148
        %v1236 = vadd.f32 %v1235, %v1152
        %v1237 = vadd.f32 %v1236, %v1156
        %v1238 = vadd.f32 %v1237, %v1160
        %v1239 = vadd.f32 %v1238, %v1164
        %v1240 = vadd.f32 %v1239, %v1168
        %v1241 = vadd.f32 %v1240, %v1172
        %v1242 = vadd.f32 %v1241, %v1176
        %v1243 = vadd.f32 %v1242, %v1180
        %v1244 = vadd.f32 %v1243, %v1184
        %v1245 = vadd.f32 %v1244, %v1188
        %v1246 = vadd.f32 %v1245, %v1192
        %v1247 = vadd.f32 %v1246, %v1196
        %v1248 = vadd.f32 %v1247, %v1200
        %v1249 = vadd.f32 %v1248, %v1204
        %v1250 = vadd.f32 %v1249, %v1208
        %v1251 = vadd.f32 %v1250, %v1212
        %v1252 = vadd.f32 %v1251, %v1216
        %v1253 = vadd.f32 %v1252, %v1220
        %v1254 = vrot.slane %v1253, 4
        %v1255 = vadd.f32 %v1253, %v1254
        %v1256 = vrot.slane %v1255, 2
        %v1257 = vadd.f32 %v1255, %v1256
        %v1258 = vrot.slane %v1257, 1
        %v1259 = vadd.f32 %v1257, %v1258
        %v1260 = vadd.f32 %v1098, %v1102
        %v1261 = vadd.f32 %v1260, %v1106
        %v1262 = vadd.f32 %v1261, %v1110
        %v1263 = vadd.f32 %v1262, %v1114
        %v1264 = vadd.f32 %v1263, %v1118
        %v1265 = vadd.f32 %v1264, %v1122
        %v1266 = vadd.f32 %v1265, %v1126
        %v1267 = vadd.f32 %v1266, %v1130
        %v1268 = vadd.f32 %v1267, %v1134
        %v1269 = vadd.f32 %v1268, %v1138
        %v1270 = vadd.f32 %v1269, %v1142
        %v1271 = vadd.f32 %v1270, %v1146
        %v1272 = vadd.f32 %v1271, %v1150
        %v1273 = vadd.f32 %v1272, %v1154
        %v1274 = vadd.f32 %v1273, %v1158
        %v1275 = vadd.f32 %v1274, %v1162
        %v1276 = vadd.f32 %v1275, %v1166
        %v1277 = vadd.f32 %v1276, %v1170
        %v1278 = vadd.f32 %v1277, %v1174
        %v1279 = vadd.f32 %v1278, %v1178
        %v1280 = vadd.f32 %v1279, %v1182
        %v1281 = vadd.f32 %v1280, %v1186
        %v1282 = vadd.f32 %v1281, %v1190
        %v1283 = vadd.f32 %v1282, %v1194
        %v1284 = vadd.f32 %v1283, %v1198
        %v1285 = vadd.f32 %v1284, %v1202
        %v1286 = vadd.f32 %v1285, %v1206
        %v1287 = vadd.f32 %v1286, %v1210
        %v1288 = vadd.f32 %v1287, %v1214
        %v1289 = vadd.f32 %v1288, %v1218
        %v1290 = vadd.f32 %v1289, %v1222
        %v1291 = vrot.slane %v1290, 4
        %v1292 = vadd.f32 %v1290, %v1291
        %v1293 = vrot.slane %v1292, 2
        %v1294 = vadd.f32 %v1292, %v1293
        %v1295 = vrot.slane %v1294, 1
        %v1296 = vadd.f32 %v1294, %v1295
        %v1297 = vpack.c.bf16 %v1100, %v1096
        %v1298 = vpack.c.bf16 %v1102, %v1098
        %v1299 = vpack.c.bf16 %v1108, %v1104
        %v1300 = vpack.c.bf16 %v1110, %v1106
        %v1301 = vpack.c.bf16 %v1116, %v1112
        %v1302 = vpack.c.bf16 %v1118, %v1114
        %v1303 = vpack.c.bf16 %v1124, %v1120
        %v1304 = vpack.c.bf16 %v1126, %v1122
        %v1305 = vpack.c.bf16 %v1132, %v1128
        %v1306 = vpack.c.bf16 %v1134, %v1130
        %v1307 = vpack.c.bf16 %v1140, %v1136
        %v1308 = vpack.c.bf16 %v1142, %v1138
        %v1309 = vpack.c.bf16 %v1148, %v1144
        %v1310 = vpack.c.bf16 %v1150, %v1146
        %v1311 = vpack.c.bf16 %v1156, %v1152
        %v1312 = vpack.c.bf16 %v1158, %v1154
        %v1313 = vpack.c.bf16 %v1164, %v1160
        %v1314 = vpack.c.bf16 %v1166, %v1162
        %v1315 = vpack.c.bf16 %v1172, %v1168
        %v1316 = vpack.c.bf16 %v1174, %v1170
        %v1317 = vpack.c.bf16 %v1180, %v1176
        %v1318 = vpack.c.bf16 %v1182, %v1178
        %v1319 = vpack.c.bf16 %v1188, %v1184
        %v1320 = vpack.c.bf16 %v1190, %v1186
        %v1321 = vpack.c.bf16 %v1196, %v1192
        %v1322 = vpack.c.bf16 %v1198, %v1194
        %v1323 = vpack.c.bf16 %v1204, %v1200
        %v1324 = vpack.c.bf16 %v1206, %v1202
        %v1325 = vpack.c.bf16 %v1212, %v1208
        %v1326 = vpack.c.bf16 %v1214, %v1210
        %v1327 = vpack.c.bf16 %v1220, %v1216
        %v1328 = vpack.c.bf16 %v1222, %v1218
        %1329 = vmatprep.subr.bf16.mxu0 %v1298
        %1330 = vmatpush1.bf16.msra.mxu0 %v1297
        %1331 = vmatprep.subr.bf16.mxu0 %v1300
        %1332 = vmatpush1.bf16.msra.mxu0 %v1299
        %1333 = vmatprep.subr.bf16.mxu0 %v1302
        %1334 = vmatpush1.bf16.msra.mxu0 %v1301
        %1335 = vmatprep.subr.bf16.mxu0 %v1304
        %1336 = vmatpush1.bf16.msra.mxu0 %v1303
        %1337 = vmatprep.subr.bf16.mxu0 %v1306
        %1338 = vmatpush1.bf16.msra.mxu0 %v1305
        %1339 = vmatprep.subr.bf16.mxu0 %v1308
        %1340 = vmatpush1.bf16.msra.mxu0 %v1307
        %1341 = vmatprep.subr.bf16.mxu0 %v1310
        %1342 = vmatpush1.bf16.msra.mxu0 %v1309
        %1343 = vmatprep.subr.bf16.mxu0 %v1312
        %1344 = vmatpush1.bf16.msra.mxu0 %v1311
        %1345 = vmatprep.subr.bf16.mxu0 %v1314
        %1346 = vmatpush1.bf16.msra.mxu0 %v1313
        %1347 = vmatprep.subr.bf16.mxu0 %v1316
        %1348 = vmatpush1.bf16.msra.mxu0 %v1315
        %1349 = vmatprep.subr.bf16.mxu0 %v1318
        %1350 = vmatpush1.bf16.msra.mxu0 %v1317
        %1351 = vmatprep.subr.bf16.mxu0 %v1320
        %1352 = vmatpush1.bf16.msra.mxu0 %v1319
        %1353 = vmatprep.subr.bf16.mxu0 %v1322
        %1354 = vmatpush1.bf16.msra.mxu0 %v1321
        %1355 = vmatprep.subr.bf16.mxu0 %v1324
        %1356 = vmatpush1.bf16.msra.mxu0 %v1323
        %1357 = vmatprep.subr.bf16.mxu0 %v1326
        %1358 = vmatpush1.bf16.msra.mxu0 %v1325
        %1359 = vmatprep.subr.bf16.mxu0 %v1328
        %1360 = vmatpush1.bf16.msra.mxu0 %v1327
        %1361 = vmatprep.mubr.bf16.mxu0 %v668
        %1362 = vmatmul.mubr.bf16.gmra.mrb[0].mxu0 %v667
        %v1363 = vpop.f32.mrb[0].mxu0
        %v1364 = vadd.f32 0.0, %v1363
        %v1365 = vpop.f32.mrb[0].mxu0
        %v1366 = vadd.f32 0.0, %v1365
        %v1367 = vpop.f32.mrb[0].mxu0
        %v1368 = vadd.f32 0.0, %v1367
        %v1369 = vpop.f32.mrb[0].mxu0
        %v1370 = vadd.f32 0.0, %v1369
        %1371 = vmatprep.mubr.bf16.mxu0 %v670
        %1372 = vmatmul.mubr.bf16.gmra.mrb[0].mxu0 %v669
        %v1373 = vpop.f32.mrb[0].mxu0
        %v1374 = vadd.f32 0.0, %v1373
        %v1375 = vpop.f32.mrb[0].mxu0
        %v1376 = vadd.f32 0.0, %v1375
        %v1377 = vpop.f32.mrb[0].mxu0
        %v1378 = vadd.f32 0.0, %v1377
        %v1379 = vpop.f32.mrb[0].mxu0
        %v1380 = vadd.f32 0.0, %v1379
        %1381 = vmatprep.mubr.bf16.mxu0 %v672
        %1382 = vmatmul.mubr.bf16.gmra.mrb[0].mxu0 %v671
        %v1383 = vpop.f32.mrb[0].mxu0
        %v1384 = vadd.f32 0.0, %v1383
        %v1385 = vpop.f32.mrb[0].mxu0
        %v1386 = vadd.f32 0.0, %v1385
        %v1387 = vpop.f32.mrb[0].mxu0
        %v1388 = vadd.f32 0.0, %v1387
        %v1389 = vpop.f32.mrb[0].mxu0
        %v1390 = vadd.f32 0.0, %v1389
        %1391 = vmatprep.mubr.bf16.mxu0 %v674
        %1392 = vmatmul.mubr.bf16.gmra.mrb[0].mxu0 %v673
        %v1393 = vpop.f32.mrb[0].mxu0
        %v1394 = vadd.f32 0.0, %v1393
        %v1395 = vpop.f32.mrb[0].mxu0
        %v1396 = vadd.f32 0.0, %v1395
        %v1397 = vpop.f32.mrb[0].mxu0
        %v1398 = vadd.f32 0.0, %v1397
        %v1399 = vpop.f32.mrb[0].mxu0
        %v1400 = vadd.f32 0.0, %v1399
        %1401 = vmatprep.mubr.bf16.mxu0 %v676
        %1402 = vmatmul.mubr.bf16.gmra.mrb[0].mxu0 %v675
        %v1403 = vpop.f32.mrb[0].mxu0
        %v1404 = vadd.f32 0.0, %v1403
        %v1405 = vpop.f32.mrb[0].mxu0
        %v1406 = vadd.f32 0.0, %v1405
        %v1407 = vpop.f32.mrb[0].mxu0
        %v1408 = vadd.f32 0.0, %v1407
        %v1409 = vpop.f32.mrb[0].mxu0
        %v1410 = vadd.f32 0.0, %v1409
        %1411 = vmatprep.mubr.bf16.mxu0 %v678
        %1412 = vmatmul.mubr.bf16.gmra.mrb[0].mxu0 %v677
        %v1413 = vpop.f32.mrb[0].mxu0
        %v1414 = vadd.f32 0.0, %v1413
        %v1415 = vpop.f32.mrb[0].mxu0
        %v1416 = vadd.f32 0.0, %v1415
        %v1417 = vpop.f32.mrb[0].mxu0
        %v1418 = vadd.f32 0.0, %v1417
        %v1419 = vpop.f32.mrb[0].mxu0
        %v1420 = vadd.f32 0.0, %v1419
        %1421 = vmatprep.mubr.bf16.mxu0 %v680
        %1422 = vmatmul.mubr.bf16.gmra.mrb[0].mxu0 %v679
        %v1423 = vpop.f32.mrb[0].mxu0
        %v1424 = vadd.f32 0.0, %v1423
        %v1425 = vpop.f32.mrb[0].mxu0
        %v1426 = vadd.f32 0.0, %v1425
        %v1427 = vpop.f32.mrb[0].mxu0
        %v1428 = vadd.f32 0.0, %v1427
        %v1429 = vpop.f32.mrb[0].mxu0
        %v1430 = vadd.f32 0.0, %v1429
        %1431 = vmatprep.mubr.bf16.mxu0 %v682
        %1432 = vmatmul.mubr.bf16.gmra.mrb[0].mxu0 %v681
        %v1433 = vpop.f32.mrb[0].mxu0
        %v1434 = vadd.f32 0.0, %v1433
        %v1435 = vpop.f32.mrb[0].mxu0
        %v1436 = vadd.f32 0.0, %v1435
        %v1437 = vpop.f32.mrb[0].mxu0
        %v1438 = vadd.f32 0.0, %v1437
        %v1439 = vpop.f32.mrb[0].mxu0
        %v1440 = vadd.f32 0.0, %v1439
        %1441 = vdwg.mxu0
        %s1442 = smul.addr %s659, 8
        %s1443 = scalar_lea.vmem %s206, %s1442 [#allocation4]
        %v1444 = vld [vmem:[%s1443] sm:$0xff]
        %v1445 = vld [vmem:[%s1443 + $0x8] sm:$0xff]
        %v1446 = vld [vmem:[%s1443 + $0x10] sm:$0xff]
        %v1447 = vld [vmem:[%s1443 + $0x18] sm:$0xff]
        %v1448 = vld [vmem:[%s1443 + $0x20] sm:$0xff]
        %v1449 = vld [vmem:[%s1443 + $0x28] sm:$0xff]
        %v1450 = vld [vmem:[%s1443 + $0x30] sm:$0xff]
        %v1451 = vld [vmem:[%s1443 + $0x38] sm:$0xff]
        %v1452 = vld [vmem:[%s1443 + $0x40] sm:$0xff]
        %v1453 = vld [vmem:[%s1443 + $0x48] sm:$0xff]
        %v1454 = vld [vmem:[%s1443 + $0x50] sm:$0xff]
        %v1455 = vld [vmem:[%s1443 + $0x58] sm:$0xff]
        %v1456 = vld [vmem:[%s1443 + $0x60] sm:$0xff]
        %v1457 = vld [vmem:[%s1443 + $0x68] sm:$0xff]
        %v1458 = vld [vmem:[%s1443 + $0x70] sm:$0xff]
        %v1459 = vld [vmem:[%s1443 + $0x78] sm:$0xff]
        %v1460 = vld [vmem:[%s1443 + $0x80] sm:$0xff]
        %v1461 = vld [vmem:[%s1443 + $0x88] sm:$0xff]
        %v1462 = vld [vmem:[%s1443 + $0x90] sm:$0xff]
        %v1463 = vld [vmem:[%s1443 + $0x98] sm:$0xff]
        %v1464 = vld [vmem:[%s1443 + $0xa0] sm:$0xff]
        %v1465 = vld [vmem:[%s1443 + $0xa8] sm:$0xff]
        %v1466 = vld [vmem:[%s1443 + $0xb0] sm:$0xff]
        %v1467 = vld [vmem:[%s1443 + $0xb8] sm:$0xff]
        %v1468 = vld [vmem:[%s1443 + $0xc0] sm:$0xff]
        %v1469 = vld [vmem:[%s1443 + $0xc8] sm:$0xff]
        %v1470 = vld [vmem:[%s1443 + $0xd0] sm:$0xff]
        %v1471 = vld [vmem:[%s1443 + $0xd8] sm:$0xff]
        %v1472 = vld [vmem:[%s1443 + $0xe0] sm:$0xff]
        %v1473 = vld [vmem:[%s1443 + $0xe8] sm:$0xff]
        %v1474 = vld [vmem:[%s1443 + $0xf0] sm:$0xff]
        %v1475 = vld [vmem:[%s1443 + $0xf8] sm:$0xff]
        %v1476 = vrcp.pop %v1259
        %v1477 = vrcp.pop %v1296
        %s1478 = sld [smem:[#allocation3]]
        %v1479 = vmul.f32 %v1364, %v1476
        %v1480 = vmul.f32 %v1366, %v1477
        %v1481 = vmul.f32 %v1368, %v1476
        %v1482 = vmul.f32 %v1370, %v1477
        %v1483 = vmul.f32 %v1374, %v1476
        %v1484 = vmul.f32 %v1376, %v1477
        %v1485 = vmul.f32 %v1378, %v1476
        %v1486 = vmul.f32 %v1380, %v1477
        %v1487 = vmul.f32 %v1384, %v1476
        %v1488 = vmul.f32 %v1386, %v1477
        %v1489 = vmul.f32 %v1388, %v1476
        %v1490 = vmul.f32 %v1390, %v1477
        %v1491 = vmul.f32 %v1394, %v1476
        %v1492 = vmul.f32 %v1396, %v1477
        %v1493 = vmul.f32 %v1398, %v1476
        %v1494 = vmul.f32 %v1400, %v1477
        %v1495 = vmul.f32 %v1404, %v1476
        %v1496 = vmul.f32 %v1406, %v1477
        %v1497 = vmul.f32 %v1408, %v1476
        %v1498 = vmul.f32 %v1410, %v1477
        %v1499 = vmul.f32 %v1414, %v1476
        %v1500 = vmul.f32 %v1416, %v1477
        %v1501 = vmul.f32 %v1418, %v1476
        %v1502 = vmul.f32 %v1420, %v1477
        %v1503 = vmul.f32 %v1424, %v1476
        %v1504 = vmul.f32 %v1426, %v1477
        %v1505 = vmul.f32 %v1428, %v1476
        %v1506 = vmul.f32 %v1430, %v1477
        %v1507 = vmul.f32 %v1434, %v1476
        %v1508 = vmul.f32 %v1436, %v1477
        %v1509 = vmul.f32 %v1438, %v1476
        %v1510 = vmul.f32 %v1440, %v1477
        %v1511 = vstv %s1478
        %v1512 = vmul.f32 %v1511, %v1479
        %v1513 = vmul.f32 %v1511, %v1480
        %v1514 = vmul.f32 %v1511, %v1481
        %v1515 = vmul.f32 %v1511, %v1482
        %v1516 = vmul.f32 %v1511, %v1483
        %v1517 = vmul.f32 %v1511, %v1484
        %v1518 = vmul.f32 %v1511, %v1485
        %v1519 = vmul.f32 %v1511, %v1486
        %v1520 = vmul.f32 %v1511, %v1487
        %v1521 = vmul.f32 %v1511, %v1488
        %v1522 = vmul.f32 %v1511, %v1489
        %v1523 = vmul.f32 %v1511, %v1490
        %v1524 = vmul.f32 %v1511, %v1491
        %v1525 = vmul.f32 %v1511, %v1492
        %v1526 = vmul.f32 %v1511, %v1493
        %v1527 = vmul.f32 %v1511, %v1494
        %v1528 = vmul.f32 %v1511, %v1495
        %v1529 = vmul.f32 %v1511, %v1496
        %v1530 = vmul.f32 %v1511, %v1497
        %v1531 = vmul.f32 %v1511, %v1498
        %v1532 = vmul.f32 %v1511, %v1499
        %v1533 = vmul.f32 %v1511, %v1500
        %v1534 = vmul.f32 %v1511, %v1501
        %v1535 = vmul.f32 %v1511, %v1502
        %v1536 = vmul.f32 %v1511, %v1503
        %v1537 = vmul.f32 %v1511, %v1504
        %v1538 = vmul.f32 %v1511, %v1505
        %v1539 = vmul.f32 %v1511, %v1506
        %v1540 = vmul.f32 %v1511, %v1507
        %v1541 = vmul.f32 %v1511, %v1508
        %v1542 = vmul.f32 %v1511, %v1509
        %v1543 = vmul.f32 %v1511, %v1510
        %v1544 = vadd.f32 %v1512, %v1444
        %v1545 = vadd.f32 %v1513, %v1445
        %v1546 = vadd.f32 %v1514, %v1446
        %v1547 = vadd.f32 %v1515, %v1447
        %v1548 = vadd.f32 %v1516, %v1448
        %v1549 = vadd.f32 %v1517, %v1449
        %v1550 = vadd.f32 %v1518, %v1450
        %v1551 = vadd.f32 %v1519, %v1451
        %v1552 = vadd.f32 %v1520, %v1452
        %v1553 = vadd.f32 %v1521, %v1453
        %v1554 = vadd.f32 %v1522, %v1454
        %v1555 = vadd.f32 %v1523, %v1455
        %v1556 = vadd.f32 %v1524, %v1456
        %v1557 = vadd.f32 %v1525, %v1457
        %v1558 = vadd.f32 %v1526, %v1458
        %v1559 = vadd.f32 %v1527, %v1459
        %v1560 = vadd.f32 %v1528, %v1460
        %v1561 = vadd.f32 %v1529, %v1461
        %v1562 = vadd.f32 %v1530, %v1462
        %v1563 = vadd.f32 %v1531, %v1463
        %v1564 = vadd.f32 %v1532, %v1464
        %v1565 = vadd.f32 %v1533, %v1465
        %v1566 = vadd.f32 %v1534, %v1466
        %v1567 = vadd.f32 %v1535, %v1467
        %v1568 = vadd.f32 %v1536, %v1468
        %v1569 = vadd.f32 %v1537, %v1469
        %v1570 = vadd.f32 %v1538, %v1470
        %v1571 = vadd.f32 %v1539, %v1471
        %v1572 = vadd.f32 %v1540, %v1472
        %v1573 = vadd.f32 %v1541, %v1473
        %v1574 = vadd.f32 %v1542, %v1474
        %v1575 = vadd.f32 %v1543, %v1475
        %1576 = vst [vmem:[%s230] sm:$0xff] %v1544
        %1577 = vst [vmem:[%s230 + $0x8] sm:$0xff] %v1545
        %1578 = vst [vmem:[%s230 + $0x10] sm:$0xff] %v1546
        %1579 = vst [vmem:[%s230 + $0x18] sm:$0xff] %v1547
        %1580 = vst [vmem:[%s230 + $0x20] sm:$0xff] %v1548
        %1581 = vst [vmem:[%s230 + $0x28] sm:$0xff] %v1549
        %1582 = vst [vmem:[%s230 + $0x30] sm:$0xff] %v1550
        %1583 = vst [vmem:[%s230 + $0x38] sm:$0xff] %v1551
        %1584 = vst [vmem:[%s230 + $0x40] sm:$0xff] %v1552
        %1585 = vst [vmem:[%s230 + $0x48] sm:$0xff] %v1553
        %1586 = vst [vmem:[%s230 + $0x50] sm:$0xff] %v1554
        %1587 = vst [vmem:[%s230 + $0x58] sm:$0xff] %v1555
        %1588 = vst [vmem:[%s230 + $0x60] sm:$0xff] %v1556
        %1589 = vst [vmem:[%s230 + $0x68] sm:$0xff] %v1557
        %1590 = vst [vmem:[%s230 + $0x70] sm:$0xff] %v1558
        %1591 = vst [vmem:[%s230 + $0x78] sm:$0xff] %v1559
        %1592 = vst [vmem:[%s230 + $0x80] sm:$0xff] %v1560
        %1593 = vst [vmem:[%s230 + $0x88] sm:$0xff] %v1561
        %1594 = vst [vmem:[%s230 + $0x90] sm:$0xff] %v1562
        %1595 = vst [vmem:[%s230 + $0x98] sm:$0xff] %v1563
        %1596 = vst [vmem:[%s230 + $0xa0] sm:$0xff] %v1564
        %1597 = vst [vmem:[%s230 + $0xa8] sm:$0xff] %v1565
        %1598 = vst [vmem:[%s230 + $0xb0] sm:$0xff] %v1566
        %1599 = vst [vmem:[%s230 + $0xb8] sm:$0xff] %v1567
        %1600 = vst [vmem:[%s230 + $0xc0] sm:$0xff] %v1568
        %1601 = vst [vmem:[%s230 + $0xc8] sm:$0xff] %v1569
        %1602 = vst [vmem:[%s230 + $0xd0] sm:$0xff] %v1570
        %1603 = vst [vmem:[%s230 + $0xd8] sm:$0xff] %v1571
        %1604 = vst [vmem:[%s230 + $0xe0] sm:$0xff] %v1572
        %1605 = vst [vmem:[%s230 + $0xe8] sm:$0xff] %v1573
        %1606 = vst [vmem:[%s230 + $0xf0] sm:$0xff] %v1574
        %1607 = vst [vmem:[%s230 + $0xf8] sm:$0xff] %v1575
        %s1608 = sand.u32 %s133, 1
        %s1609 = scalar_lea.sflag [#allocation6], %s1608
        %s1610 = sand.u32 %s133, 1
        %s1611 = smul.addr %s1610, 256
        %s1612 = scalar_lea.vmem [#allocation7], %s1611
        // Predicated region
        $region45: #{tpu_custom_call.1} parent=35 // pred_check
          %p1613 = pneg %p143
        $region46: #{tpu_custom_call.1} parent=35 // pred_check_branch
          %1615 = sbr.rel (%p1613) target = $region48
        $region47: #{tpu_custom_call.1} parent=35 // pred_region
          %s1616 = smul.u32 2, %s27
          %s1618 = ssub.s32 4096, 4096
          %1619 = vsyncadd %s1609, %s1618
          %s1620 = smul.addr %s26, 32
          %s1621 = sadd.s32 %s1616, %s1620
          %s1622 = smul.addr %s1621, 128
          %s1623 = scalar_lea.hbm %s4, %s1622
          %s1624 = sshll.u32 %s1612, 4
          %s1625 = int_to_ptr.vmem [resolvable:$true] %s1624
          %1630 = dma.vmem_to_hbm [thread:$0]  %s1625, 4096, %s1623, %s1609, 256, 256, 16
        $region48: #{tpu_custom_call.1} parent=35 // pred_fallthru
          _
      $region36: #{tpu_custom_call.1} parent=5 // pred_fallthru
        _
      %p1631 = scmp.le.s32.totalorder 2, %s17
      // Predicated region
      $region49: #{tpu_custom_call.1} parent=5 // pred_check
        %p1632 = pneg %p1631
      $region50: #{tpu_custom_call.1} parent=5 // pred_check_branch
        %1634 = sbr.rel (%p1632) target = $region52
      $region51: #{tpu_custom_call.1} parent=5 // pred_region
        %s1635 = ssub.s32 %s17, 2
        // Predicated region
        $region53: #{tpu_custom_call.1} parent=51 // pred_check
          %p1636 = pneg %p149
        $region54: #{tpu_custom_call.1} parent=51 // pred_check_branch
          %1638 = sbr.rel (%p1636) target = $region56
        $region55: #{tpu_custom_call.1} parent=51 // pred_region
          %s1639 = sand.u32 %s134, 1
          %s1640 = scalar_lea.sflag [#allocation6], %s1639
          %s1641 = sand.u32 %s134, 1
          %s1642 = smul.addr %s1641, 256
          %s1643 = scalar_lea.vmem [#allocation7], %s1642
          %1644 = dma.done %s1640, 4096
        $region56: #{tpu_custom_call.1} parent=51 // pred_fallthru
          _
      $region52: #{tpu_custom_call.1} parent=5 // pred_fallthru
        _
    $region6: #{tpu_custom_call.1} parent=1 // loop_footer
      %s21 = sadd.s32 1, %s17
    $region7: #{tpu_custom_call.1} parent=1 // loop_footer_branch
      %16 = sbr.rel target = $region3
    $region8: #{tpu_custom_call.1} parent=1 // loop_exit
      _
    %1645 = vsyncpa [#allocation5], 1
    %s1646 = scalar_lea.sflag [#allocation5], 1
    %1647 = vsyncpa %s1646, 1
    %1648 = vsyncpa [#allocation6], 1
    %s1649 = scalar_lea.sflag [#allocation6], 1
    %1650 = vsyncpa %s1649, 1

</llo_original>
